<compile_context>
chip_gen: v6e
topology: v6e:2x2x1
jax: 0.10.0
libtpu: 0.0.40
codegen_flags: <defaults>
</compile_context>

<pallas_src>
import numpy as np

import jax
import jax.numpy as jnp
from jax.experimental import pallas as pl
from jax.experimental.pallas import tpu as pltpu


# ----------------------------------------------------------------------------
# Hard-coded tiny-YOLO topology / input geometry
# ----------------------------------------------------------------------------
C_IN = 4
C1, C2 = 16, 32
NUM_ANCHORS, NUM_CLASSES = 3, 4
C_HEAD = NUM_ANCHORS * (5 + NUM_CLASSES)          # 27
H = W = 16
HW = H * W                                        # 256 = 2 x 128 lanes (dense)
H_OUT, W_OUT = H // 4, W // 4
N_OUT = H_OUT * W_OUT                             # 16


# ----------------------------------------------------------------------------
# Compile-time constants (numpy): boundary masks + pool-selection matrix
# ----------------------------------------------------------------------------
def _tap_masks(step):
    """(9, H*W) 0/1 masks: tap (dh, dw) is valid at fine position (h, w) iff
    the coarse neighbour (h//step + dh, w//step + dw) lies inside the
    (H//step, W//step) grid.  step=1 -> layer-1 conv, step=2 -> layer-2 conv
    operating on the pooled grid embedded in the fine 16x16 layout."""
    hh = np.arange(H)[:, None] // step
    ww = np.arange(W)[None, :] // step
    hc, wc = H // step, W // step
    rows = []
    for dh in (-1, 0, 1):
        for dw in (-1, 0, 1):
            m = ((hh + dh >= 0) & (hh + dh < hc) &
                 (ww + dw >= 0) & (ww + dw < wc))
            rows.append(m.reshape(-1))
    return np.stack(rows).astype(np.float32)


def _pool_select():
    """(H*W, N_OUT) 0/1 matrix selecting the mod-4-aligned fine positions
    (i.e. the 4x4 grid of final detection cells) in row-major order."""
    s = np.zeros((HW, N_OUT), np.float32)
    for q in range(N_OUT):
        i, j = divmod(q, W_OUT)
        s[(4 * i) * W + 4 * j, q] = 1.0
    return s


_M1_NP = np.repeat(_tap_masks(1), C_IN, axis=0)    # (36, 256)
_M2_NP = np.repeat(_tap_masks(2), C1, axis=0)      # (144, 256)
_SEL_NP = _pool_select()                           # (256, 16)


# ----------------------------------------------------------------------------
# Fused Pallas kernel (one image per grid step)
# ----------------------------------------------------------------------------
def _yolo_fused_kernel(x_ref, w1_ref, b1_ref, m1_ref,
                       w2_ref, b2_ref, m2_ref,
                       sel_ref, w3_ref, b3_ref, o_ref):
    x = x_ref[0]                                           # (C_IN, 256)

    def conv3x3(act, w_ref_, b_ref_, m_ref_, step):
        # Shift-and-mask im2col: col[t*Cin + ci, p] = act[ci, p + step*(dh*W+dw)]
        # zeroed outside the image, then one (Cout, 9*Cin) x (9*Cin, 256) matmul.
        taps = []
        for dh in (-1, 0, 1):
            for dw in (-1, 0, 1):
                d = step * (dh * W + dw)
                taps.append(act if d == 0
                            else pltpu.roll(act, shift=(-d) % HW, axis=1))
        col = jnp.concatenate(taps, axis=0)                # (9*Cin, 256)
        col = jnp.where(m_ref_[...] > 0.5, col, 0.0)       # in-register zero pad
        y = jnp.dot(w_ref_[...], col, preferred_element_type=jnp.float32)
        return y + b_ref_[...]                             # (Cout, 256)

    def maxpool2x2(y, step):
        # 2x2 max over the coarse grid embedded in the 256-lane layout; results
        # are valid at positions that are multiples of 2*step (compacted later).
        hmax = jnp.maximum(y, pltpu.roll(y, shift=(-step) % HW, axis=1))
        return jnp.maximum(hmax, pltpu.roll(hmax, shift=(-step * W) % HW, axis=1))

    # conv1 (3x3, BN folded) + LeakyReLU + pool
    y1 = conv3x3(x, w1_ref, b1_ref, m1_ref, step=1)        # (16, 256)
    y1 = jnp.where(y1 > 0.0, y1, 0.1 * y1)
    p1 = maxpool2x2(y1, step=1)

    # conv2 (3x3, BN folded, on the pooled grid) + LeakyReLU + pool
    y2 = conv3x3(p1, w2_ref, b2_ref, m2_ref, step=2)       # (32, 256)
    y2 = jnp.where(y2 > 0.0, y2, 0.1 * y2)
    p2 = maxpool2x2(y2, step=2)

    # Compact the 16 valid detection cells, then the 1x1 detection head.
    z = jnp.dot(p2, sel_ref[...], preferred_element_type=jnp.float32)   # (32, 16)
    o_ref[0] = (jnp.dot(w3_ref[...], z, preferred_element_type=jnp.float32)
                + b3_ref[...])                             # (27, 16)


# ----------------------------------------------------------------------------
# Wrapper
# ----------------------------------------------------------------------------
@jax.jit
def yolo_forward(x_nchw, params):
    B = x_nchw.shape[0]
    assert x_nchw.shape == (B, C_IN, H, W), x_nchw.shape
    # NCHW -> channel-major flat spatial: pure reshape, no transpose.
    x = x_nchw.reshape(B, C_IN, HW).astype(jnp.float32)

    # Fold BN scale into the conv weights at trace time; pre-transpose to
    # (Cout, 9*Cin) so each conv is a single MXU matmul in the kernel.
    w1t = (params["w1"] * params["s1"][None, None, None, :]).reshape(9 * C_IN, C1).T
    w2t = (params["w2"] * params["s2"][None, None, None, :]).reshape(9 * C1, C2).T
    w3t = params["w3"].reshape(C2, C_HEAD).T
    b1 = params["b1"].reshape(C1, 1)
    b2 = params["b2"].reshape(C2, 1)
    b3 = params["b3"].reshape(C_HEAD, 1)

    m1 = jnp.asarray(_M1_NP)
    m2 = jnp.asarray(_M2_NP)
    sel = jnp.asarray(_SEL_NP)

    out = pl.pallas_call(
        _yolo_fused_kernel,
        out_shape=jax.ShapeDtypeStruct((B, C_HEAD, N_OUT), jnp.float32),
        grid=(B,),
        in_specs=[
            pl.BlockSpec((1, C_IN, HW), lambda b: (b, 0, 0)),       # x
            pl.BlockSpec((C1, 9 * C_IN), lambda b: (0, 0)),         # w1t
            pl.BlockSpec((C1, 1), lambda b: (0, 0)),                # b1
            pl.BlockSpec((9 * C_IN, HW), lambda b: (0, 0)),         # mask1
            pl.BlockSpec((C2, 9 * C1), lambda b: (0, 0)),           # w2t
            pl.BlockSpec((C2, 1), lambda b: (0, 0)),                # b2
            pl.BlockSpec((9 * C1, HW), lambda b: (0, 0)),           # mask2
            pl.BlockSpec((HW, N_OUT), lambda b: (0, 0)),            # pool select
            pl.BlockSpec((C_HEAD, C2), lambda b: (0, 0)),           # w3t
            pl.BlockSpec((C_HEAD, 1), lambda b: (0, 0)),            # b3
        ],
        out_specs=pl.BlockSpec((1, C_HEAD, N_OUT), lambda b: (b, 0, 0)),
        compiler_params=pltpu.CompilerParams(
            dimension_semantics=("parallel",)),
    )(x, w1t, b1, m1, w2t, b2, m2, sel, w3t, b3)

    # (B, 27, 16) -> NCHW (B, 27, 4, 4) to match the PyTorch convention.
    return out.reshape(B, C_HEAD, H_OUT, W_OUT)


# ----------------------------------------------------------------------------
# Parameter construction (deterministic, synthetic)
# ----------------------------------------------------------------------------
def init_params(key):
    ks = jax.random.split(key, 11)

    def he(k, shape, fan_in):
        return jax.random.normal(k, shape, jnp.float32) * jnp.sqrt(2.0 / fan_in)

    def folded_bn(k1, k2, k3, k4, c, eps=1e-5):
        gamma = 1.0 + 0.1 * jax.random.normal(k1, (c,), jnp.float32)
        beta = 0.1 * jax.random.normal(k2, (c,), jnp.float32)
        mean = 0.05 * jax.random.normal(k3, (c,), jnp.float32)
        var = jnp.abs(1.0 + 0.1 * jax.random.normal(k4, (c,), jnp.float32))
        scale = gamma / jnp.sqrt(var + eps)
        bias = beta - mean * scale
        return scale, bias

    params = {}
    params["w1"] = he(ks[0], (3, 3, C_IN, C1), 9 * C_IN)           # HWIO
    params["s1"], params["b1"] = folded_bn(ks[1], ks[2], ks[3], ks[4], C1)
    params["w2"] = he(ks[5], (3, 3, C1, C2), 9 * C1)
    params["s2"], params["b2"] = folded_bn(ks[6], ks[7], ks[8], ks[9], C2)
    params["w3"] = he(ks[10], (1, 1, C2, C_HEAD), C2)              # 1x1 head
    params["b3"] = 0.01 * jnp.arange(C_HEAD, dtype=jnp.float32)
    return params


if __name__ == "__main__":
    key = jax.random.PRNGKey(0)
    k_x, k_p = jax.random.split(key)

    # (batch, channels, H, W) — small input consistent with the image model.
    x = jax.random.normal(k_x, (2, C_IN, H, W), jnp.float32)
    params = init_params(k_p)

    out = jax.block_until_ready(yolo_forward(x, params))

    expected_shape = (2, C_HEAD, H_OUT, W_OUT)   # (2, 27, 4, 4)
    assert out.shape == expected_shape, out.shape
    assert bool(jnp.all(jnp.isfinite(out)))
    print("KERNEL_OK")
</pallas_src>

<mosaic_0001>
module attributes {stable_mosaic.version = 11 : i64} {
  func.func @_yolo_fused_kernel(%arg0: i32, %arg1: memref<1x4x256xf32, #tpu.memory_space<vmem>>, %arg2: memref<16x36xf32, #tpu.memory_space<vmem>>, %arg3: memref<16x1xf32, #tpu.memory_space<vmem>>, %arg4: memref<36x256xf32, #tpu.memory_space<vmem>>, %arg5: memref<32x144xf32, #tpu.memory_space<vmem>>, %arg6: memref<32x1xf32, #tpu.memory_space<vmem>>, %arg7: memref<144x256xf32, #tpu.memory_space<vmem>>, %arg8: memref<256x16xf32, #tpu.memory_space<vmem>>, %arg9: memref<27x32xf32, #tpu.memory_space<vmem>>, %arg10: memref<27x1xf32, #tpu.memory_space<vmem>>, %arg11: memref<1x27x16xf32, #tpu.memory_space<vmem>>) attributes {dimension_semantics = [#tpu.dimension_semantics<parallel>], iteration_bounds = array<i64: 2>, scalar_prefetch = 0 : i64, scratch_operands = 0 : i64, tpu.core_type = #tpu.core_type<tc>, window_params = [{transform_indices = @transform_0, window_bounds = array<i64: 1, 4, 256>}, {pipeline_mode = #tpu.pipeline_mode<synchronous>, transform_indices = @transform_1, window_bounds = array<i64: 16, 36>}, {pipeline_mode = #tpu.pipeline_mode<synchronous>, transform_indices = @transform_2, window_bounds = array<i64: 16, 1>}, {pipeline_mode = #tpu.pipeline_mode<synchronous>, transform_indices = @transform_3, window_bounds = array<i64: 36, 256>}, {pipeline_mode = #tpu.pipeline_mode<synchronous>, transform_indices = @transform_4, window_bounds = array<i64: 32, 144>}, {pipeline_mode = #tpu.pipeline_mode<synchronous>, transform_indices = @transform_5, window_bounds = array<i64: 32, 1>}, {pipeline_mode = #tpu.pipeline_mode<synchronous>, transform_indices = @transform_6, window_bounds = array<i64: 144, 256>}, {pipeline_mode = #tpu.pipeline_mode<synchronous>, transform_indices = @transform_7, window_bounds = array<i64: 256, 16>}, {pipeline_mode = #tpu.pipeline_mode<synchronous>, transform_indices = @transform_8, window_bounds = array<i64: 27, 32>}, {pipeline_mode = #tpu.pipeline_mode<synchronous>, transform_indices = @transform_9, window_bounds = array<i64: 27, 1>}, {transform_indices = @transform_10, window_bounds = array<i64: 1, 27, 16>}]} {
    %c0 = arith.constant 0 : index
    %c0_0 = arith.constant 0 : index
    %c0_1 = arith.constant 0 : index
    %0 = vector.load %arg1[%c0, %c0_0, %c0_1] : memref<1x4x256xf32, #tpu.memory_space<vmem>>, vector<1x4x256xf32>
    %1 = vector.shape_cast %0 : vector<1x4x256xf32> to vector<4x256xf32>
    %c17_i32 = arith.constant 17 : i32
    %2 = tpu.dynamic_rotate %1 by %c17_i32 dim 1 : vector<4x256xf32>, i32 -> vector<4x256xf32>
    %c16_i32 = arith.constant 16 : i32
    %3 = tpu.dynamic_rotate %1 by %c16_i32 dim 1 : vector<4x256xf32>, i32 -> vector<4x256xf32>
    %c15_i32 = arith.constant 15 : i32
    %4 = tpu.dynamic_rotate %1 by %c15_i32 dim 1 : vector<4x256xf32>, i32 -> vector<4x256xf32>
    %c1_i32 = arith.constant 1 : i32
    %5 = tpu.dynamic_rotate %1 by %c1_i32 dim 1 : vector<4x256xf32>, i32 -> vector<4x256xf32>
    %c255_i32 = arith.constant 255 : i32
    %6 = tpu.dynamic_rotate %1 by %c255_i32 dim 1 : vector<4x256xf32>, i32 -> vector<4x256xf32>
    %c241_i32 = arith.constant 241 : i32
    %7 = tpu.dynamic_rotate %1 by %c241_i32 dim 1 : vector<4x256xf32>, i32 -> vector<4x256xf32>
    %c240_i32 = arith.constant 240 : i32
    %8 = tpu.dynamic_rotate %1 by %c240_i32 dim 1 : vector<4x256xf32>, i32 -> vector<4x256xf32>
    %c239_i32 = arith.constant 239 : i32
    %9 = tpu.dynamic_rotate %1 by %c239_i32 dim 1 : vector<4x256xf32>, i32 -> vector<4x256xf32>
    %10 = tpu.concatenate %2, %3, %4, %5, %1, %6, %7, %8, %9 in 0 : vector<4x256xf32>, vector<4x256xf32>, vector<4x256xf32>, vector<4x256xf32>, vector<4x256xf32>, vector<4x256xf32>, vector<4x256xf32>, vector<4x256xf32>, vector<4x256xf32> -> vector<36x256xf32>
    %c0_2 = arith.constant 0 : index
    %c0_3 = arith.constant 0 : index
    %11 = vector.load %arg4[%c0_2, %c0_3] : memref<36x256xf32, #tpu.memory_space<vmem>>, vector<36x256xf32>
    %cst = arith.constant 5.000000e-01 : f32
    %12 = vector.broadcast %cst : f32 to vector<36x256xf32>
    %13 = arith.cmpf ogt, %11, %12 : vector<36x256xf32>
    %cst_4 = arith.constant 0.000000e+00 : f32
    %14 = vector.broadcast %cst_4 : f32 to vector<36x256xf32>
    %15 = arith.select %13, %10, %14 : vector<36x256xi1>, vector<36x256xf32>
    %c0_5 = arith.constant 0 : index
    %c0_6 = arith.constant 0 : index
    %16 = vector.load %arg2[%c0_5, %c0_6] : memref<16x36xf32, #tpu.memory_space<vmem>>, vector<16x36xf32>
    %cst_7 = arith.constant dense<0.000000e+00> : vector<16x256xf32>
    %17 = tpu.matmul %16, %15, %cst_7 {dimension_numbers = #tpu.dot_dimension_numbers<[1], [0], [0], [1], [0, 0, 1, 1], [], []>} : vector<16x36xf32>, vector<36x256xf32>, vector<16x256xf32> -> vector<16x256xf32>
    %c0_8 = arith.constant 0 : index
    %c0_9 = arith.constant 0 : index
    %18 = vector.load %arg3[%c0_8, %c0_9] : memref<16x1xf32, #tpu.memory_space<vmem>>, vector<16x1xf32>
    %19 = vector.broadcast %18 : vector<16x1xf32> to vector<16x256xf32>
    %20 = arith.addf %17, %19 : vector<16x256xf32>
    %cst_10 = arith.constant 0.000000e+00 : f32
    %21 = vector.broadcast %cst_10 : f32 to vector<16x256xf32>
    %22 = arith.cmpf ogt, %20, %21 : vector<16x256xf32>
    %cst_11 = arith.constant 1.000000e-01 : f32
    %23 = vector.broadcast %cst_11 : f32 to vector<16x256xf32>
    %24 = arith.mulf %23, %20 : vector<16x256xf32>
    %25 = arith.select %22, %20, %24 : vector<16x256xi1>, vector<16x256xf32>
    %c255_i32_12 = arith.constant 255 : i32
    %26 = tpu.dynamic_rotate %25 by %c255_i32_12 dim 1 : vector<16x256xf32>, i32 -> vector<16x256xf32>
    %27 = arith.maximumf %25, %26 : vector<16x256xf32>
    %c240_i32_13 = arith.constant 240 : i32
    %28 = tpu.dynamic_rotate %27 by %c240_i32_13 dim 1 : vector<16x256xf32>, i32 -> vector<16x256xf32>
    %29 = arith.maximumf %27, %28 : vector<16x256xf32>
    %c34_i32 = arith.constant 34 : i32
    %30 = tpu.dynamic_rotate %29 by %c34_i32 dim 1 : vector<16x256xf32>, i32 -> vector<16x256xf32>
    %c32_i32 = arith.constant 32 : i32
    %31 = tpu.dynamic_rotate %29 by %c32_i32 dim 1 : vector<16x256xf32>, i32 -> vector<16x256xf32>
    %c30_i32 = arith.constant 30 : i32
    %32 = tpu.dynamic_rotate %29 by %c30_i32 dim 1 : vector<16x256xf32>, i32 -> vector<16x256xf32>
    %c2_i32 = arith.constant 2 : i32
    %33 = tpu.dynamic_rotate %29 by %c2_i32 dim 1 : vector<16x256xf32>, i32 -> vector<16x256xf32>
    %c254_i32 = arith.constant 254 : i32
    %34 = tpu.dynamic_rotate %29 by %c254_i32 dim 1 : vector<16x256xf32>, i32 -> vector<16x256xf32>
    %c226_i32 = arith.constant 226 : i32
    %35 = tpu.dynamic_rotate %29 by %c226_i32 dim 1 : vector<16x256xf32>, i32 -> vector<16x256xf32>
    %c224_i32 = arith.constant 224 : i32
    %36 = tpu.dynamic_rotate %29 by %c224_i32 dim 1 : vector<16x256xf32>, i32 -> vector<16x256xf32>
    %c222_i32 = arith.constant 222 : i32
    %37 = tpu.dynamic_rotate %29 by %c222_i32 dim 1 : vector<16x256xf32>, i32 -> vector<16x256xf32>
    %38 = tpu.concatenate %30, %31, %32, %33, %29, %34, %35, %36, %37 in 0 : vector<16x256xf32>, vector<16x256xf32>, vector<16x256xf32>, vector<16x256xf32>, vector<16x256xf32>, vector<16x256xf32>, vector<16x256xf32>, vector<16x256xf32>, vector<16x256xf32> -> vector<144x256xf32>
    %c0_14 = arith.constant 0 : index
    %c0_15 = arith.constant 0 : index
    %39 = vector.load %arg7[%c0_14, %c0_15] : memref<144x256xf32, #tpu.memory_space<vmem>>, vector<144x256xf32>
    %cst_16 = arith.constant 5.000000e-01 : f32
    %40 = vector.broadcast %cst_16 : f32 to vector<144x256xf32>
    %41 = arith.cmpf ogt, %39, %40 : vector<144x256xf32>
    %cst_17 = arith.constant 0.000000e+00 : f32
    %42 = vector.broadcast %cst_17 : f32 to vector<144x256xf32>
    %43 = arith.select %41, %38, %42 : vector<144x256xi1>, vector<144x256xf32>
    %c0_18 = arith.constant 0 : index
    %c0_19 = arith.constant 0 : index
    %44 = vector.load %arg5[%c0_18, %c0_19] : memref<32x144xf32, #tpu.memory_space<vmem>>, vector<32x144xf32>
    %cst_20 = arith.constant dense<0.000000e+00> : vector<32x256xf32>
    %45 = tpu.matmul %44, %43, %cst_20 {dimension_numbers = #tpu.dot_dimension_numbers<[1], [0], [0], [1], [0, 0, 1, 1], [], []>} : vector<32x144xf32>, vector<144x256xf32>, vector<32x256xf32> -> vector<32x256xf32>
    %c0_21 = arith.constant 0 : index
    %c0_22 = arith.constant 0 : index
    %46 = vector.load %arg6[%c0_21, %c0_22] : memref<32x1xf32, #tpu.memory_space<vmem>>, vector<32x1xf32>
    %47 = vector.broadcast %46 : vector<32x1xf32> to vector<32x256xf32>
    %48 = arith.addf %45, %47 : vector<32x256xf32>
    %cst_23 = arith.constant 0.000000e+00 : f32
    %49 = vector.broadcast %cst_23 : f32 to vector<32x256xf32>
    %50 = arith.cmpf ogt, %48, %49 : vector<32x256xf32>
    %cst_24 = arith.constant 1.000000e-01 : f32
    %51 = vector.broadcast %cst_24 : f32 to vector<32x256xf32>
    %52 = arith.mulf %51, %48 : vector<32x256xf32>
    %53 = arith.select %50, %48, %52 : vector<32x256xi1>, vector<32x256xf32>
    %c254_i32_25 = arith.constant 254 : i32
    %54 = tpu.dynamic_rotate %53 by %c254_i32_25 dim 1 : vector<32x256xf32>, i32 -> vector<32x256xf32>
    %55 = arith.maximumf %53, %54 : vector<32x256xf32>
    %c224_i32_26 = arith.constant 224 : i32
    %56 = tpu.dynamic_rotate %55 by %c224_i32_26 dim 1 : vector<32x256xf32>, i32 -> vector<32x256xf32>
    %57 = arith.maximumf %55, %56 : vector<32x256xf32>
    %c0_27 = arith.constant 0 : index
    %c0_28 = arith.constant 0 : index
    %58 = vector.load %arg8[%c0_27, %c0_28] : memref<256x16xf32, #tpu.memory_space<vmem>>, vector<256x16xf32>
    %cst_29 = arith.constant dense<0.000000e+00> : vector<32x16xf32>
    %59 = tpu.matmul %57, %58, %cst_29 {dimension_numbers = #tpu.dot_dimension_numbers<[1], [0], [0], [1], [0, 0, 1, 1], [], []>} : vector<32x256xf32>, vector<256x16xf32>, vector<32x16xf32> -> vector<32x16xf32>
    %c0_30 = arith.constant 0 : index
    %c0_31 = arith.constant 0 : index
    %60 = vector.load %arg9[%c0_30, %c0_31] : memref<27x32xf32, #tpu.memory_space<vmem>>, vector<27x32xf32>
    %cst_32 = arith.constant dense<0.000000e+00> : vector<27x16xf32>
    %61 = tpu.matmul %60, %59, %cst_32 {dimension_numbers = #tpu.dot_dimension_numbers<[1], [0], [0], [1], [0, 0, 1, 1], [], []>} : vector<27x32xf32>, vector<32x16xf32>, vector<27x16xf32> -> vector<27x16xf32>
    %c0_33 = arith.constant 0 : index
    %c0_34 = arith.constant 0 : index
    %62 = vector.load %arg10[%c0_33, %c0_34] : memref<27x1xf32, #tpu.memory_space<vmem>>, vector<27x1xf32>
    %63 = vector.broadcast %62 : vector<27x1xf32> to vector<27x16xf32>
    %64 = arith.addf %61, %63 : vector<27x16xf32>
    %c0_35 = arith.constant 0 : index
    %c0_36 = arith.constant 0 : index
    %c0_37 = arith.constant 0 : index
    %65 = vector.load %arg11[%c0_35, %c0_36, %c0_37] : memref<1x27x16xf32, #tpu.memory_space<vmem>>, vector<1x27x16xf32>
    %66 = vector.shape_cast %65 : vector<1x27x16xf32> to vector<27x16xf32>
    %67 = vector.shape_cast %64 : vector<27x16xf32> to vector<1x27x16xf32>
    tpu.vector_store %arg11[%c0_35, %c0_36, %c0_37], %67 {strides = array<i32>} : memref<1x27x16xf32, #tpu.memory_space<vmem>>, vector<1x27x16xf32>,
    return
  }
  func.func @transform_0(%arg0: i32) -> (i32, i32, i32) {
    %c0_i32 = arith.constant 0 : i32
    %c0_i32_0 = arith.constant 0 : i32
    %c0_i32_1 = arith.constant 0 : i32
    return %arg0, %c0_i32, %c0_i32_0 : i32, i32, i32
  }
  func.func @transform_1(%arg0: i32) -> (i32, i32) {
    %c0_i32 = arith.constant 0 : i32
    %c0_i32_0 = arith.constant 0 : i32
    %c0_i32_1 = arith.constant 0 : i32
    return %c0_i32, %c0_i32_0 : i32, i32
  }
  func.func @transform_2(%arg0: i32) -> (i32, i32) {
    %c0_i32 = arith.constant 0 : i32
    %c0_i32_0 = arith.constant 0 : i32
    %c0_i32_1 = arith.constant 0 : i32
    return %c0_i32, %c0_i32_0 : i32, i32
  }
  func.func @transform_3(%arg0: i32) -> (i32, i32) {
    %c0_i32 = arith.constant 0 : i32
    %c0_i32_0 = arith.constant 0 : i32
    %c0_i32_1 = arith.constant 0 : i32
    return %c0_i32, %c0_i32_0 : i32, i32
  }
  func.func @transform_4(%arg0: i32) -> (i32, i32) {
    %c0_i32 = arith.constant 0 : i32
    %c0_i32_0 = arith.constant 0 : i32
    %c0_i32_1 = arith.constant 0 : i32
    return %c0_i32, %c0_i32_0 : i32, i32
  }
  func.func @transform_5(%arg0: i32) -> (i32, i32) {
    %c0_i32 = arith.constant 0 : i32
    %c0_i32_0 = arith.constant 0 : i32
    %c0_i32_1 = arith.constant 0 : i32
    return %c0_i32, %c0_i32_0 : i32, i32
  }
  func.func @transform_6(%arg0: i32) -> (i32, i32) {
    %c0_i32 = arith.constant 0 : i32
    %c0_i32_0 = arith.constant 0 : i32
    %c0_i32_1 = arith.constant 0 : i32
    return %c0_i32, %c0_i32_0 : i32, i32
  }
  func.func @transform_7(%arg0: i32) -> (i32, i32) {
    %c0_i32 = arith.constant 0 : i32
    %c0_i32_0 = arith.constant 0 : i32
    %c0_i32_1 = arith.constant 0 : i32
    return %c0_i32, %c0_i32_0 : i32, i32
  }
  func.func @transform_8(%arg0: i32) -> (i32, i32) {
    %c0_i32 = arith.constant 0 : i32
    %c0_i32_0 = arith.constant 0 : i32
    %c0_i32_1 = arith.constant 0 : i32
    return %c0_i32, %c0_i32_0 : i32, i32
  }
  func.func @transform_9(%arg0: i32) -> (i32, i32) {
    %c0_i32 = arith.constant 0 : i32
    %c0_i32_0 = arith.constant 0 : i32
    %c0_i32_1 = arith.constant 0 : i32
    return %c0_i32, %c0_i32_0 : i32, i32
  }
  func.func @transform_10(%arg0: i32) -> (i32, i32, i32) {
    %c0_i32 = arith.constant 0 : i32
    %c0_i32_0 = arith.constant 0 : i32
    %c0_i32_1 = arith.constant 0 : i32
    return %arg0, %c0_i32, %c0_i32_0 : i32, i32, i32
  }
}

</mosaic_0001>

<llo_original>
// kernel: yolo_forward.1
$region0: #{yolo_forward.1}
  #allocation0 [shape = 'u32[]', space=smem, size = 0x4, offset = 0x4, fixed_abs, tag = 'smem constant byte address 0x4 - core index']
  #allocation1 [shape = 'u32[144,128]{1,0:T(1,128)}', space=vmem, size = 0x12000, scoped, tag = 'internal scratch']
  %s0 = inlined_call_operand.vmem [shape: f32[2,4,256], index: 0, kind: input, shape index: {}]
  %s1 = inlined_call_operand.vmem [shape: f32[16,36], index: 1, kind: input, shape index: {}]
  %s2 = inlined_call_operand.vmem [shape: f32[16,1], index: 2, kind: input, shape index: {}]
  %s3 = inlined_call_operand.vmem [shape: f32[36,256], index: 3, kind: input, shape index: {}]
  %s4 = inlined_call_operand.vmem [shape: f32[32,144], index: 4, kind: input, shape index: {}]
  %s5 = inlined_call_operand.vmem [shape: f32[32,1], index: 5, kind: input, shape index: {}]
  %s6 = inlined_call_operand.vmem [shape: f32[144,256], index: 6, kind: input, shape index: {}]
  %s7 = inlined_call_operand.vmem [shape: f32[256,16], index: 7, kind: input, shape index: {}]
  %s8 = inlined_call_operand.vmem [shape: f32[27,32], index: 8, kind: input, shape index: {}]
  %s9 = inlined_call_operand.vmem [shape: f32[27,1], index: 9, kind: input, shape index: {}]
  %s10 = inlined_call_operand.vmem [shape: f32[2,27,16], index: 10, kind: output, shape index: {}]
  %s11 = sld [smem:[#allocation0]]
  $region73: #{yolo_forward.1} parent=0
    _
  %s13 = ssub.s32 1, %s11
  %s14 = scalar_select 0, %s13, %s11
  loop: start=0, step=1, limit=4
  $region2: #{yolo_forward.1} parent=0 // loop_pre_header
    _
  $region3: #{yolo_forward.1} parent=0 // loop_header
    %s16 = sphi 0, %s20
    %p17 = scmp.ge.s32.totalorder %s16, 4
    %s26 = sphi 0, %s28
    %s29 = sphi 0, %s26
    %s30 = sphi 0, %s29
    %s46 = sphi 0, %s30
    %s50 = sphi 0, %s50
    %s52 = sphi 0, %s50
    %s53 = sphi 0, %s52
    %s67 = sphi 0, %s53
    %s71 = sphi 0, %s71
    %s73 = sphi 0, %s71
    %s74 = sphi 0, %s73
    %s88 = sphi 0, %s74
    %s92 = sphi 0, %s92
    %s94 = sphi 0, %s92
    %s95 = sphi 0, %s94
    %s109 = sphi 0, %s95
    %s113 = sphi 0, %s113
    %s115 = sphi 0, %s113
    %s116 = sphi 0, %s115
    %s130 = sphi 0, %s116
    %s134 = sphi 0, %s134
    %s136 = sphi 0, %s134
    %s137 = sphi 0, %s136
    %s151 = sphi 0, %s137
    %s155 = sphi 0, %s155
    %s157 = sphi 0, %s155
    %s158 = sphi 0, %s157
    %s172 = sphi 0, %s158
    %s176 = sphi 0, %s176
    %s178 = sphi 0, %s176
    %s179 = sphi 0, %s178
    %s193 = sphi 0, %s179
    %s197 = sphi 0, %s197
    %s199 = sphi 0, %s197
    %s200 = sphi 0, %s199
    %s214 = sphi 0, %s200
    %s218 = sphi 0, %s218
    %s220 = sphi 0, %s218
    %s221 = sphi 0, %s220
    %s235 = sphi 0, %s221
    %s241 = sphi 0, %s243
    %s244 = sphi 0, %s241
    %s245 = sphi 0, %s244
    %s261 = sphi 0, %s245
  $region4: #{yolo_forward.1} parent=0 // loop_header_branch
    %19 = sbr.rel (%p17) target = $region8
  $region5: #{yolo_forward.1} parent=0 // loop_body
    %s21 = ssub.s32 %s16, 1
    %s22 = ssub.s32 %s16, 2
    %s23 = sadd.s32 %s16, 1
    %s24 = ssub.s32 %s16, %s23
    %p25 = scmp.eq.s32.totalorder %s24, 0
    %s27 = sadd.s32 %s26, 1
    %s28 = scalar_select %p25, %s26, %s27
    %p31 = pneg %p25
    %p32 = scmp.eq.s32.totalorder %s16, 1
    %p33 = por %p31, %p32
    %p34 = scmp.ne.s32.totalorder %s26, %s29
    %p35 = scmp.eq.s32.totalorder %s16, 0
    %p36 = por %p34, %p35
    %p37 = scmp.ne.s32.totalorder %s26, %s29
    %p38 = scmp.eq.s32.totalorder %s21, 1
    %p39 = por %p37, %p38
    %p40 = scmp.ne.s32.totalorder %s29, %s30
    %p41 = scmp.eq.s32.totalorder %s21, 0
    %p42 = por %p40, %p41
    %p43 = scmp.ne.s32.totalorder %s29, %s30
    %p44 = scmp.eq.s32.totalorder %s22, 1
    %p45 = por %p43, %p44
    %p47 = scmp.ne.s32.totalorder %s30, %s46
    %p48 = scmp.eq.s32.totalorder %s22, 0
    %p49 = por %p47, %p48
    %s51 = sadd.s32 %s50, 1
    %p54 = scmp.eq.s32.totalorder %s16, 1
    %p55 = scmp.ne.s32.totalorder %s50, %s52
    %p56 = scmp.eq.s32.totalorder %s16, 0
    %p57 = por %p55, %p56
    %p58 = scmp.ne.s32.totalorder %s50, %s52
    %p59 = scmp.eq.s32.totalorder %s21, 1
    %p60 = por %p58, %p59
    %p61 = scmp.ne.s32.totalorder %s52, %s53
    %p62 = scmp.eq.s32.totalorder %s21, 0
    %p63 = por %p61, %p62
    %p64 = scmp.ne.s32.totalorder %s52, %s53
    %p65 = scmp.eq.s32.totalorder %s22, 1
    %p66 = por %p64, %p65
    %p68 = scmp.ne.s32.totalorder %s53, %s67
    %p69 = scmp.eq.s32.totalorder %s22, 0
    %p70 = por %p68, %p69
    %s72 = sadd.s32 %s71, 1
    %p75 = scmp.eq.s32.totalorder %s16, 1
    %p76 = scmp.ne.s32.totalorder %s71, %s73
    %p77 = scmp.eq.s32.totalorder %s16, 0
    %p78 = por %p76, %p77
    %p79 = scmp.ne.s32.totalorder %s71, %s73
    %p80 = scmp.eq.s32.totalorder %s21, 1
    %p81 = por %p79, %p80
    %p82 = scmp.ne.s32.totalorder %s73, %s74
    %p83 = scmp.eq.s32.totalorder %s21, 0
    %p84 = por %p82, %p83
    %p85 = scmp.ne.s32.totalorder %s73, %s74
    %p86 = scmp.eq.s32.totalorder %s22, 1
    %p87 = por %p85, %p86
    %p89 = scmp.ne.s32.totalorder %s74, %s88
    %p90 = scmp.eq.s32.totalorder %s22, 0
    %p91 = por %p89, %p90
    %s93 = sadd.s32 %s92, 1
    %p96 = scmp.eq.s32.totalorder %s16, 1
    %p97 = scmp.ne.s32.totalorder %s92, %s94
    %p98 = scmp.eq.s32.totalorder %s16, 0
    %p99 = por %p97, %p98
    %p100 = scmp.ne.s32.totalorder %s92, %s94
    %p101 = scmp.eq.s32.totalorder %s21, 1
    %p102 = por %p100, %p101
    %p103 = scmp.ne.s32.totalorder %s94, %s95
    %p104 = scmp.eq.s32.totalorder %s21, 0
    %p105 = por %p103, %p104
    %p106 = scmp.ne.s32.totalorder %s94, %s95
    %p107 = scmp.eq.s32.totalorder %s22, 1
    %p108 = por %p106, %p107
    %p110 = scmp.ne.s32.totalorder %s95, %s109
    %p111 = scmp.eq.s32.totalorder %s22, 0
    %p112 = por %p110, %p111
    %s114 = sadd.s32 %s113, 1
    %p117 = scmp.eq.s32.totalorder %s16, 1
    %p118 = scmp.ne.s32.totalorder %s113, %s115
    %p119 = scmp.eq.s32.totalorder %s16, 0
    %p120 = por %p118, %p119
    %p121 = scmp.ne.s32.totalorder %s113, %s115
    %p122 = scmp.eq.s32.totalorder %s21, 1
    %p123 = por %p121, %p122
    %p124 = scmp.ne.s32.totalorder %s115, %s116
    %p125 = scmp.eq.s32.totalorder %s21, 0
    %p126 = por %p124, %p125
    %p127 = scmp.ne.s32.totalorder %s115, %s116
    %p128 = scmp.eq.s32.totalorder %s22, 1
    %p129 = por %p127, %p128
    %p131 = scmp.ne.s32.totalorder %s116, %s130
    %p132 = scmp.eq.s32.totalorder %s22, 0
    %p133 = por %p131, %p132
    %s135 = sadd.s32 %s134, 1
    %p138 = scmp.eq.s32.totalorder %s16, 1
    %p139 = scmp.ne.s32.totalorder %s134, %s136
    %p140 = scmp.eq.s32.totalorder %s16, 0
    %p141 = por %p139, %p140
    %p142 = scmp.ne.s32.totalorder %s134, %s136
    %p143 = scmp.eq.s32.totalorder %s21, 1
    %p144 = por %p142, %p143
    %p145 = scmp.ne.s32.totalorder %s136, %s137
    %p146 = scmp.eq.s32.totalorder %s21, 0
    %p147 = por %p145, %p146
    %p148 = scmp.ne.s32.totalorder %s136, %s137
    %p149 = scmp.eq.s32.totalorder %s22, 1
    %p150 = por %p148, %p149
    %p152 = scmp.ne.s32.totalorder %s137, %s151
    %p153 = scmp.eq.s32.totalorder %s22, 0
    %p154 = por %p152, %p153
    %s156 = sadd.s32 %s155, 1
    %p159 = scmp.eq.s32.totalorder %s16, 1
    %p160 = scmp.ne.s32.totalorder %s155, %s157
    %p161 = scmp.eq.s32.totalorder %s16, 0
    %p162 = por %p160, %p161
    %p163 = scmp.ne.s32.totalorder %s155, %s157
    %p164 = scmp.eq.s32.totalorder %s21, 1
    %p165 = por %p163, %p164
    %p166 = scmp.ne.s32.totalorder %s157, %s158
    %p167 = scmp.eq.s32.totalorder %s21, 0
    %p168 = por %p166, %p167
    %p169 = scmp.ne.s32.totalorder %s157, %s158
    %p170 = scmp.eq.s32.totalorder %s22, 1
    %p171 = por %p169, %p170
    %p173 = scmp.ne.s32.totalorder %s158, %s172
    %p174 = scmp.eq.s32.totalorder %s22, 0
    %p175 = por %p173, %p174
    %s177 = sadd.s32 %s176, 1
    %p180 = scmp.eq.s32.totalorder %s16, 1
    %p181 = scmp.ne.s32.totalorder %s176, %s178
    %p182 = scmp.eq.s32.totalorder %s16, 0
    %p183 = por %p181, %p182
    %p184 = scmp.ne.s32.totalorder %s176, %s178
    %p185 = scmp.eq.s32.totalorder %s21, 1
    %p186 = por %p184, %p185
    %p187 = scmp.ne.s32.totalorder %s178, %s179
    %p188 = scmp.eq.s32.totalorder %s21, 0
    %p189 = por %p187, %p188
    %p190 = scmp.ne.s32.totalorder %s178, %s179
    %p191 = scmp.eq.s32.totalorder %s22, 1
    %p192 = por %p190, %p191
    %p194 = scmp.ne.s32.totalorder %s179, %s193
    %p195 = scmp.eq.s32.totalorder %s22, 0
    %p196 = por %p194, %p195
    %s198 = sadd.s32 %s197, 1
    %p201 = scmp.eq.s32.totalorder %s16, 1
    %p202 = scmp.ne.s32.totalorder %s197, %s199
    %p203 = scmp.eq.s32.totalorder %s16, 0
    %p204 = por %p202, %p203
    %p205 = scmp.ne.s32.totalorder %s197, %s199
    %p206 = scmp.eq.s32.totalorder %s21, 1
    %p207 = por %p205, %p206
    %p208 = scmp.ne.s32.totalorder %s199, %s200
    %p209 = scmp.eq.s32.totalorder %s21, 0
    %p210 = por %p208, %p209
    %p211 = scmp.ne.s32.totalorder %s199, %s200
    %p212 = scmp.eq.s32.totalorder %s22, 1
    %p213 = por %p211, %p212
    %p215 = scmp.ne.s32.totalorder %s200, %s214
    %p216 = scmp.eq.s32.totalorder %s22, 0
    %p217 = por %p215, %p216
    %s219 = sadd.s32 %s218, 1
    %p222 = scmp.eq.s32.totalorder %s16, 1
    %p223 = scmp.ne.s32.totalorder %s218, %s220
    %p224 = scmp.eq.s32.totalorder %s16, 0
    %p225 = por %p223, %p224
    %p226 = scmp.ne.s32.totalorder %s218, %s220
    %p227 = scmp.eq.s32.totalorder %s21, 1
    %p228 = por %p226, %p227
    %p229 = scmp.ne.s32.totalorder %s220, %s221
    %p230 = scmp.eq.s32.totalorder %s21, 0
    %p231 = por %p229, %p230
    %p232 = scmp.ne.s32.totalorder %s220, %s221
    %p233 = scmp.eq.s32.totalorder %s22, 1
    %p234 = por %p232, %p233
    %p236 = scmp.ne.s32.totalorder %s221, %s235
    %p237 = scmp.eq.s32.totalorder %s22, 0
    %p238 = por %p236, %p237
    %s239 = ssub.s32 %s16, %s23
    %p240 = scmp.eq.s32.totalorder %s239, 0
    %s242 = sadd.s32 %s241, 1
    %s243 = scalar_select %p240, %s241, %s242
    %p246 = pneg %p240
    %p247 = scmp.eq.s32.totalorder %s16, 1
    %p248 = por %p246, %p247
    %p249 = scmp.ne.s32.totalorder %s241, %s244
    %p250 = scmp.eq.s32.totalorder %s16, 0
    %p251 = por %p249, %p250
    %p252 = scmp.ne.s32.totalorder %s241, %s244
    %p253 = scmp.eq.s32.totalorder %s21, 1
    %p254 = por %p252, %p253
    %p255 = scmp.ne.s32.totalorder %s244, %s245
    %p256 = scmp.eq.s32.totalorder %s21, 0
    %p257 = por %p255, %p256
    %p258 = scmp.ne.s32.totalorder %s244, %s245
    %p259 = scmp.eq.s32.totalorder %s22, 1
    %p260 = por %p258, %p259
    %p262 = scmp.ne.s32.totalorder %s245, %s261
    %p263 = scmp.eq.s32.totalorder %s22, 0
    %p264 = por %p262, %p263
    %p265 = scmp.le.s32.totalorder 1, %s16
    %p266 = scmp.lt.s32.totalorder %s16, 3
    %p267 = pnand %p265, %p266
    %p268 = pneg %p267
    // Predicated region
    $region9: #{yolo_forward.1} parent=5 // pred_check
      _
    $region10: #{yolo_forward.1} parent=5 // pred_check_branch
      %270 = sbr.rel (%p267) target = $region12
    $region11: #{yolo_forward.1} parent=5 // pred_region
      %s271 = ssub.s32 %s16, 1
      // Predicated region
      $region13: #{yolo_forward.1} parent=11 // pred_check
        %p272 = pneg %p63
      $region14: #{yolo_forward.1} parent=11 // pred_check_branch
        %274 = sbr.rel (%p272) target = $region16
      $region15: #{yolo_forward.1} parent=11 // pred_region
        _
      $region16: #{yolo_forward.1} parent=11 // pred_fallthru
        _
      // Predicated region
      $region17: #{yolo_forward.1} parent=11 // pred_check
        %p275 = pneg %p84
      $region18: #{yolo_forward.1} parent=11 // pred_check_branch
        %277 = sbr.rel (%p275) target = $region20
      $region19: #{yolo_forward.1} parent=11 // pred_region
        _
      $region20: #{yolo_forward.1} parent=11 // pred_fallthru
        _
      // Predicated region
      $region21: #{yolo_forward.1} parent=11 // pred_check
        %p278 = pneg %p105
      $region22: #{yolo_forward.1} parent=11 // pred_check_branch
        %280 = sbr.rel (%p278) target = $region24
      $region23: #{yolo_forward.1} parent=11 // pred_region
        _
      $region24: #{yolo_forward.1} parent=11 // pred_fallthru
        _
      // Predicated region
      $region25: #{yolo_forward.1} parent=11 // pred_check
        %p281 = pneg %p126
      $region26: #{yolo_forward.1} parent=11 // pred_check_branch
        %283 = sbr.rel (%p281) target = $region28
      $region27: #{yolo_forward.1} parent=11 // pred_region
        _
      $region28: #{yolo_forward.1} parent=11 // pred_fallthru
        _
      // Predicated region
      $region29: #{yolo_forward.1} parent=11 // pred_check
        %p284 = pneg %p147
      $region30: #{yolo_forward.1} parent=11 // pred_check_branch
        %286 = sbr.rel (%p284) target = $region32
      $region31: #{yolo_forward.1} parent=11 // pred_region
        _
      $region32: #{yolo_forward.1} parent=11 // pred_fallthru
        _
      // Predicated region
      $region33: #{yolo_forward.1} parent=11 // pred_check
        %p287 = pneg %p168
      $region34: #{yolo_forward.1} parent=11 // pred_check_branch
        %289 = sbr.rel (%p287) target = $region36
      $region35: #{yolo_forward.1} parent=11 // pred_region
        _
      $region36: #{yolo_forward.1} parent=11 // pred_fallthru
        _
      // Predicated region
      $region37: #{yolo_forward.1} parent=11 // pred_check
        %p290 = pneg %p189
      $region38: #{yolo_forward.1} parent=11 // pred_check_branch
        %292 = sbr.rel (%p290) target = $region40
      $region39: #{yolo_forward.1} parent=11 // pred_region
        _
      $region40: #{yolo_forward.1} parent=11 // pred_fallthru
        _
      // Predicated region
      $region41: #{yolo_forward.1} parent=11 // pred_check
        %p293 = pneg %p210
      $region42: #{yolo_forward.1} parent=11 // pred_check_branch
        %295 = sbr.rel (%p293) target = $region44
      $region43: #{yolo_forward.1} parent=11 // pred_region
        _
      $region44: #{yolo_forward.1} parent=11 // pred_fallthru
        _
      // Predicated region
      $region45: #{yolo_forward.1} parent=11 // pred_check
        %p296 = pneg %p231
      $region46: #{yolo_forward.1} parent=11 // pred_check_branch
        %298 = sbr.rel (%p296) target = $region48
      $region47: #{yolo_forward.1} parent=11 // pred_region
        _
      $region48: #{yolo_forward.1} parent=11 // pred_fallthru
        _
    $region12: #{yolo_forward.1} parent=5 // pred_fallthru
      _
    %p299 = scmp.lt.s32.totalorder %s16, 2
    // Predicated region
    $region49: #{yolo_forward.1} parent=5 // pred_check
      %p300 = pneg %p299
    $region50: #{yolo_forward.1} parent=5 // pred_check_branch
      %302 = sbr.rel (%p300) target = $region52
    $region51: #{yolo_forward.1} parent=5 // pred_region
      // Predicated region
      $region53: #{yolo_forward.1} parent=51 // pred_check
        %p303 = pneg %p36
      $region54: #{yolo_forward.1} parent=51 // pred_check_branch
        %305 = sbr.rel (%p303) target = $region56
      $region55: #{yolo_forward.1} parent=51 // pred_region
        %p306 = scmp.lt.s32.totalorder %s16, 1
        %s307 = scalar_select %p306, %s16, 1
        %s308 = smul.addr %s307, 2
        %s309 = smul.addr %s308, 4
        %s310 = scalar_lea.vmem %s0, %s309
      $region56: #{yolo_forward.1} parent=51 // pred_fallthru
        _
    $region52: #{yolo_forward.1} parent=5 // pred_fallthru
      _
    %p311 = scmp.le.s32.totalorder 1, %s16
    %p312 = scmp.lt.s32.totalorder %s16, 3
    %p313 = pnand %p311, %p312
    %p314 = pneg %p313
    // Predicated region
    $region57: #{yolo_forward.1} parent=5 // pred_check
      _
    $region58: #{yolo_forward.1} parent=5 // pred_check_branch
      %316 = sbr.rel (%p313) target = $region60
    $region59: #{yolo_forward.1} parent=5 // pred_region
      %s317 = ssub.s32 %s16, 1
      %p318 = scmp.lt.s32.totalorder %s21, 1
      %s319 = scalar_select %p318, %s21, 1
      %s320 = smul.addr %s319, 2
      %s321 = smul.addr %s320, 4
      %s322 = scalar_lea.vmem %s0, %s321
      %p323 = pneg %p42
      %p324 = pneg %p39
      %p325 = pneg %p63
      %p326 = pneg %p60
      %p327 = pneg %p84
      %p328 = pneg %p81
      %p329 = pneg %p105
      %p330 = pneg %p102
      %p331 = pneg %p126
      %p332 = pneg %p123
      %p333 = pneg %p147
      %p334 = pneg %p144
      %p335 = pneg %p168
      %p336 = pneg %p165
      %p337 = pneg %p189
      %p338 = pneg %p186
      %p339 = pneg %p210
      %p340 = pneg %p207
      %p341 = pneg %p231
      %p342 = pneg %p228
      %p343 = pneg %p257
      %p344 = pneg %p254
      %p345 = scmp.lt.s32.totalorder %s21, 1
      %s346 = scalar_select %p345, %s21, 1
      %s347 = smul.addr %s346, 4
      %s348 = smul.addr %s347, 8
      %s349 = scalar_lea.vmem %s10, %s348
      %p350 = scmp.lt.s32.totalorder %s21, 1
      %s351 = scalar_select %p350, %s21, 1
      %s352 = smul.addr %s351, 2
      %s353 = smul.addr %s352, 4
      %s354 = scalar_lea.vmem %s0, %s353
      %p355 = scmp.lt.s32.totalorder %s21, 1
      %s356 = scalar_select %p355, %s21, 1
      %s357 = smul.addr %s356, 4
      %s358 = smul.addr %s357, 8
      %s359 = scalar_lea.vmem %s10, %s358
      %v360 = vld [vmem:[%s354] sm:$0xff]
      %v362 = vcombine.high %v360, %v360
      %364 = vrot.lane.b32.xlu0 %v360, 17
      %v365 = vpop.permute.xlu0 %364
      %366 = vrot.lane.b32.xlu0 %v362, 17
      %v367 = vpop.permute.xlu0 %366
      %v368 = vlaneseq
      %v369 = vand.u32 %v368, 127
      %vm370 = vcmp.lt.s32.totalorder %v369, 17
      %v371 = vsel %vm370, %v365, %v367
      %v372 = vsel %vm370, %v367, %v365
      %373 = vrot.lane.b32.xlu0 %v360, 16
      %v374 = vpop.permute.xlu0 %373
      %375 = vrot.lane.b32.xlu0 %v362, 16
      %v376 = vpop.permute.xlu0 %375
      %vm377 = vcmp.lt.s32.totalorder %v369, 16
      %v378 = vsel %vm377, %v374, %v376
      %v379 = vsel %vm377, %v376, %v374
      %380 = vrot.lane.b32.xlu0 %v360, 15
      %v381 = vpop.permute.xlu0 %380
      %382 = vrot.lane.b32.xlu0 %v362, 15
      %v383 = vpop.permute.xlu0 %382
      %vm384 = vcmp.lt.s32.totalorder %v369, 15
      %v385 = vsel %vm384, %v381, %v383
      %v386 = vsel %vm384, %v383, %v381
      %387 = vrot.lane.b32.xlu0 %v360, 1
      %v388 = vpop.permute.xlu0 %387
      %389 = vrot.lane.b32.xlu0 %v362, 1
      %v390 = vpop.permute.xlu0 %389
      %vm391 = vcmp.lt.s32.totalorder %v369, 1
      %v392 = vsel %vm391, %v388, %v390
      %v393 = vsel %vm391, %v390, %v388
      %394 = vrot.lane.b32.xlu0 %v360, 127
      %v395 = vpop.permute.xlu0 %394
      %396 = vrot.lane.b32.xlu0 %v362, 127
      %v397 = vpop.permute.xlu0 %396
      %vm398 = vcmp.lt.s32.totalorder %v369, 127
      %v399 = vsel %vm398, %v395, %v397
      %v400 = vsel %vm398, %v397, %v395
      %401 = vrot.lane.b32.xlu0 %v360, 113
      %v402 = vpop.permute.xlu0 %401
      %403 = vrot.lane.b32.xlu0 %v362, 113
      %v404 = vpop.permute.xlu0 %403
      %vm405 = vcmp.lt.s32.totalorder %v369, 113
      %v406 = vsel %vm405, %v402, %v404
      %v407 = vsel %vm405, %v404, %v402
      %408 = vrot.lane.b32.xlu0 %v360, 112
      %v409 = vpop.permute.xlu0 %408
      %410 = vrot.lane.b32.xlu0 %v362, 112
      %v411 = vpop.permute.xlu0 %410
      %vm412 = vcmp.lt.s32.totalorder %v369, 112
      %v413 = vsel %vm412, %v409, %v411
      %v414 = vsel %vm412, %v411, %v409
      %415 = vrot.lane.b32.xlu0 %v360, 111
      %v416 = vpop.permute.xlu0 %415
      %417 = vrot.lane.b32.xlu0 %v362, 111
      %v418 = vpop.permute.xlu0 %417
      %vm419 = vcmp.lt.s32.totalorder %v369, 111
      %v420 = vsel %vm419, %v416, %v418
      %v421 = vsel %vm419, %v418, %v416
      %v424 = vrot.slane %v379, 4
      %v425 = vrot.slane %v378, 4
      %v430 = vrot.slane %v393, 4
      %v431 = vrot.slane %v392, 4
      %v436 = vrot.slane %v399, 4
      %v437 = vrot.slane %v400, 4
      %v442 = vrot.slane %v413, 4
      %v443 = vrot.slane %v414, 4
      %vm446 = vcmask 1043456
      %v447 = vsel %vm446, %v372, %v424
      %v448 = vsel %vm446, %v371, %v425
      %v449 = vsel %vm446, %v386, %v430
      %v450 = vsel %vm446, %v385, %v431
      %v451 = vsel %vm446, %v360, %v436
      %v452 = vsel %vm446, %v362, %v437
      %v453 = vsel %vm446, %v406, %v442
      %v454 = vsel %vm446, %v407, %v443
      %v455 = vld [vmem:[%s3] sm:$0xff]
      %v456 = vld [vmem:[%s3 + $0x8] sm:$0xff]
      %v457 = vld [vmem:[%s3 + $0x10] sm:$0xff]
      %v458 = vld [vmem:[%s3 + $0x18] sm:$0xff]
      %v459 = vld [vmem:[%s3 + $0x20] sm:$0xff]
      %v460 = vld [vmem:[%s3 + $0x28] sm:$0xff]
      %v461 = vld [vmem:[%s3 + $0x30] sm:$0xff]
      %v462 = vld [vmem:[%s3 + $0x38] sm:$0xff]
      %v463 = vld [vmem:[%s3 + $0x40] sm:$0xf]
      %v464 = vld [vmem:[%s3 + $0x48] sm:$0xf]
      %vm465 = vcmp.gt.f32.partialorder %v455, 0.5
      %vm466 = vcmp.gt.f32.partialorder %v456, 0.5
      %vm467 = vcmp.gt.f32.partialorder %v457, 0.5
      %vm468 = vcmp.gt.f32.partialorder %v458, 0.5
      %vm469 = vcmp.gt.f32.partialorder %v459, 0.5
      %vm470 = vcmp.gt.f32.partialorder %v460, 0.5
      %vm471 = vcmp.gt.f32.partialorder %v461, 0.5
      %vm472 = vcmp.gt.f32.partialorder %v462, 0.5
      %vm473 = vcmp.gt.f32.partialorder %v463, 0.5
      %vm474 = vcmp.gt.f32.partialorder %v464, 0.5
      %v475 = vsel %vm465, %v447, 0.0
      %v476 = vsel %vm466, %v448, 0.0
      %v477 = vsel %vm467, %v449, 0.0
      %v478 = vsel %vm468, %v450, 0.0
      %v479 = vsel %vm469, %v451, 0.0
      %v480 = vsel %vm470, %v452, 0.0
      %v481 = vsel %vm471, %v453, 0.0
      %v482 = vsel %vm472, %v454, 0.0
      %v483 = vsel %vm473, %v420, 0.0
      %v484 = vsel %vm474, %v421, 0.0
      %v485 = vld [vmem:[%s1] sm:$0xff]
      %v486 = vld [vmem:[%s1 + $0x8] sm:$0xff]
      %v487 = vld [vmem:[%s2] sm:$0xff]
      %v488 = vld [vmem:[%s2 + $0x8] sm:$0xff]
      %490 = vset.pattern.permute.xlu0 0
      %491 = vperm.xlu0 %490, %v487
      %v492 = vpop.permute.xlu0 %491
      %495 = vset.pattern.permute.xlu0 0
      %496 = vperm.xlu0 %495, %v488
      %v497 = vpop.permute.xlu0 %496
      %vm499 = vcmask 293888
      %v501 = vsel %vm499, %v485, 0
      %v504 = vsel %vm499, %v486, 0
      %v507 = vsel %vm446, %v483, 0
      %v510 = vsel %vm446, %v484, 0
      %512 = vmatprep.subr.mxu0 0.0
      %513 = vmatpush1.msra.mxu0 0.0
      %514 = vmatprep.subr.mxu0 0.0
      %515 = vmatpush1.msra.mxu0 0.0
      %516 = vmatprep.subr.mxu0 0.0
      %517 = vmatpush1.msra.mxu0 0.0
      %518 = vmatprep.subr.mxu0 0.0
      %519 = vmatpush1.msra.mxu0 0.0
      %520 = vmatprep.subr.mxu0 0.0
      %521 = vmatpush1.msra.mxu0 0.0
      %522 = vmatprep.subr.mxu0 0.0
      %523 = vmatpush1.msra.mxu0 0.0
      %524 = vmatprep.subr.mxu0 0.0
      %525 = vmatpush1.msra.mxu0 0.0
      %526 = vmatprep.subr.mxu0 0.0
      %527 = vmatpush1.msra.mxu0 0.0
      %528 = vmatprep.subr.mxu0 0.0
      %529 = vmatpush1.msra.mxu0 0.0
      %530 = vmatprep.subr.mxu0 0.0
      %531 = vmatpush1.msra.mxu0 0.0
      %532 = vmatprep.subr.mxu0 0.0
      %533 = vmatpush1.msra.mxu0 0.0
      %534 = vmatprep.subr.mxu0 %v510
      %535 = vmatpush1.msra.mxu0 %v507
      %536 = vmatprep.subr.mxu0 %v482
      %537 = vmatpush1.msra.mxu0 %v481
      %538 = vmatprep.subr.mxu0 %v480
      %539 = vmatpush1.msra.mxu0 %v479
      %540 = vmatprep.subr.mxu0 %v478
      %541 = vmatpush1.msra.mxu0 %v477
      %542 = vmatprep.subr.mxu0 %v476
      %543 = vmatpush1.msra.mxu0 %v475
      %544 = vmatprep.subr.mxu0 0.0
      %545 = vmatpush2.msra.mxu0 0.0
      %546 = vmatprep.subr.mxu0 0.0
      %547 = vmatpush2.msra.mxu0 0.0
      %548 = vmatprep.subr.mxu0 0.0
      %549 = vmatpush2.msra.mxu0 0.0
      %550 = vmatprep.subr.mxu0 0.0
      %551 = vmatpush2.msra.mxu0 0.0
      %552 = vmatprep.subr.mxu0 0.0
      %553 = vmatpush2.msra.mxu0 0.0
      %554 = vmatprep.subr.mxu0 0.0
      %555 = vmatpush2.msra.mxu0 0.0
      %556 = vmatprep.subr.mxu0 0.0
      %557 = vmatpush2.msra.mxu0 0.0
      %558 = vmatprep.subr.mxu0 0.0
      %559 = vmatpush2.msra.mxu0 0.0
      %560 = vmatprep.subr.mxu0 0.0
      %561 = vmatpush2.msra.mxu0 0.0
      %562 = vmatprep.subr.mxu0 0.0
      %563 = vmatpush2.msra.mxu0 0.0
      %564 = vmatprep.subr.mxu0 0.0
      %565 = vmatpush2.msra.mxu0 0.0
      %566 = vmatprep.subr.mxu0 0.0
      %567 = vmatpush2.msra.mxu0 0.0
      %568 = vmatprep.subr.mxu0 0.0
      %569 = vmatpush2.msra.mxu0 0.0
      %570 = vmatprep.subr.mxu0 0.0
      %571 = vmatpush2.msra.mxu0 0.0
      %572 = vmatprep.subr.mxu0 0.0
      %573 = vmatpush2.msra.mxu0 0.0
      %574 = vmatprep.subr.mxu0 0.0
      %575 = vmatpush2.msra.mxu0 0.0
      %576 = vmatprep.mubr.f32.mxu0 0.0
      %577 = vmatmul.mubr.f32.gmra.mxu0 %v501
      %v578 = vpop.f32.mrf.mxu0
      %v579 = vadd.f32 %v492, %v578
      %v580 = vpop.f32.mrf.mxu0
      %v581 = vadd.f32 %v492, %v580
      %582 = vmatprep.mubr.f32.mxu0 0.0
      %583 = vmatmul.mubr.f32.gmra.mxu0 %v504
      %v584 = vpop.f32.mrf.mxu0
      %v585 = vadd.f32 %v497, %v584
      %v586 = vpop.f32.mrf.mxu0
      %v587 = vadd.f32 %v497, %v586
      %588 = vdwg.mxu0
      %vm589 = vcmp.gt.f32.partialorder %v579, 0.0
      %vm590 = vcmp.gt.f32.partialorder %v581, 0.0
      %vm591 = vcmp.gt.f32.partialorder %v585, 0.0
      %vm592 = vcmp.gt.f32.partialorder %v587, 0.0
      %v593 = vmul.f32 %v579, 0.1
      %v594 = vmul.f32 %v581, 0.1
      %v595 = vmul.f32 %v585, 0.1
      %v596 = vmul.f32 %v587, 0.1
      %v597 = vsel %vm589, %v579, %v593
      %v598 = vsel %vm590, %v581, %v594
      %v599 = vsel %vm591, %v585, %v595
      %v600 = vsel %vm592, %v587, %v596
      %601 = vrot.lane.b32.xlu0 %v597, 127
      %v602 = vpop.permute.xlu0 %601
      %603 = vrot.lane.b32.xlu0 %v599, 127
      %v604 = vpop.permute.xlu0 %603
      %605 = vrot.lane.b32.xlu0 %v598, 127
      %v606 = vpop.permute.xlu0 %605
      %607 = vrot.lane.b32.xlu0 %v600, 127
      %v608 = vpop.permute.xlu0 %607
      %v609 = vsel %vm398, %v602, %v606
      %v610 = vsel %vm398, %v604, %v608
      %v611 = vsel %vm398, %v606, %v602
      %v612 = vsel %vm398, %v608, %v604
      %v613 = vmax.f32 %v597, %v609
      %v614 = vmax.f32 %v598, %v611
      %v615 = vmax.f32 %v599, %v610
      %v616 = vmax.f32 %v600, %v612
      %617 = vrot.lane.b32.xlu0 %v613, 112
      %v618 = vpop.permute.xlu0 %617
      %619 = vrot.lane.b32.xlu0 %v615, 112
      %v620 = vpop.permute.xlu0 %619
      %621 = vrot.lane.b32.xlu0 %v614, 112
      %v622 = vpop.permute.xlu0 %621
      %623 = vrot.lane.b32.xlu0 %v616, 112
      %v624 = vpop.permute.xlu0 %623
      %v625 = vsel %vm412, %v618, %v622
      %v626 = vsel %vm412, %v620, %v624
      %v627 = vsel %vm412, %v622, %v618
      %v628 = vsel %vm412, %v624, %v620
      %v629 = vmax.f32 %v613, %v625
      %v630 = vmax.f32 %v614, %v627
      %v631 = vmax.f32 %v615, %v626
      %v632 = vmax.f32 %v616, %v628
      %633 = vrot.lane.b32.xlu0 %v629, 34
      %v634 = vpop.permute.xlu0 %633
      %635 = vrot.lane.b32.xlu0 %v631, 34
      %v636 = vpop.permute.xlu0 %635
      %637 = vrot.lane.b32.xlu0 %v630, 34
      %v638 = vpop.permute.xlu0 %637
      %639 = vrot.lane.b32.xlu0 %v632, 34
      %v640 = vpop.permute.xlu0 %639
      %vm641 = vcmp.lt.s32.totalorder %v369, 34
      %v642 = vsel %vm641, %v634, %v638
      %v643 = vsel %vm641, %v636, %v640
      %v644 = vsel %vm641, %v638, %v634
      %v645 = vsel %vm641, %v640, %v636
      %646 = vrot.lane.b32.xlu0 %v629, 32
      %v647 = vpop.permute.xlu0 %646
      %648 = vrot.lane.b32.xlu0 %v631, 32
      %v649 = vpop.permute.xlu0 %648
      %650 = vrot.lane.b32.xlu0 %v630, 32
      %v651 = vpop.permute.xlu0 %650
      %652 = vrot.lane.b32.xlu0 %v632, 32
      %v653 = vpop.permute.xlu0 %652
      %vm654 = vcmp.lt.s32.totalorder %v369, 32
      %v655 = vsel %vm654, %v647, %v651
      %v656 = vsel %vm654, %v649, %v653
      %v657 = vsel %vm654, %v651, %v647
      %v658 = vsel %vm654, %v653, %v649
      %659 = vrot.lane.b32.xlu0 %v629, 30
      %v660 = vpop.permute.xlu0 %659
      %661 = vrot.lane.b32.xlu0 %v631, 30
      %v662 = vpop.permute.xlu0 %661
      %663 = vrot.lane.b32.xlu0 %v630, 30
      %v664 = vpop.permute.xlu0 %663
      %665 = vrot.lane.b32.xlu0 %v632, 30
      %v666 = vpop.permute.xlu0 %665
      %vm667 = vcmp.lt.s32.totalorder %v369, 30
      %v668 = vsel %vm667, %v660, %v664
      %v669 = vsel %vm667, %v662, %v666
      %v670 = vsel %vm667, %v664, %v660
      %v671 = vsel %vm667, %v666, %v662
      %672 = vrot.lane.b32.xlu0 %v629, 2
      %v673 = vpop.permute.xlu0 %672
      %674 = vrot.lane.b32.xlu0 %v631, 2
      %v675 = vpop.permute.xlu0 %674
      %676 = vrot.lane.b32.xlu0 %v630, 2
      %v677 = vpop.permute.xlu0 %676
      %678 = vrot.lane.b32.xlu0 %v632, 2
      %v679 = vpop.permute.xlu0 %678
      %vm680 = vcmp.lt.s32.totalorder %v369, 2
      %v681 = vsel %vm680, %v673, %v677
      %v682 = vsel %vm680, %v675, %v679
      %v683 = vsel %vm680, %v677, %v673
      %v684 = vsel %vm680, %v679, %v675
      %685 = vrot.lane.b32.xlu0 %v629, 126
      %v686 = vpop.permute.xlu0 %685
      %687 = vrot.lane.b32.xlu0 %v631, 126
      %v688 = vpop.permute.xlu0 %687
      %689 = vrot.lane.b32.xlu0 %v630, 126
      %v690 = vpop.permute.xlu0 %689
      %691 = vrot.lane.b32.xlu0 %v632, 126
      %v692 = vpop.permute.xlu0 %691
      %vm693 = vcmp.lt.s32.totalorder %v369, 126
      %v694 = vsel %vm693, %v686, %v690
      %v695 = vsel %vm693, %v688, %v692
      %v696 = vsel %vm693, %v690, %v686
      %v697 = vsel %vm693, %v692, %v688
      %698 = vrot.lane.b32.xlu0 %v629, 98
      %v699 = vpop.permute.xlu0 %698
      %700 = vrot.lane.b32.xlu0 %v631, 98
      %v701 = vpop.permute.xlu0 %700
      %702 = vrot.lane.b32.xlu0 %v630, 98
      %v703 = vpop.permute.xlu0 %702
      %704 = vrot.lane.b32.xlu0 %v632, 98
      %v705 = vpop.permute.xlu0 %704
      %vm706 = vcmp.lt.s32.totalorder %v369, 98
      %v707 = vsel %vm706, %v699, %v703
      %v708 = vsel %vm706, %v701, %v705
      %v709 = vsel %vm706, %v703, %v699
      %v710 = vsel %vm706, %v705, %v701
      %711 = vrot.lane.b32.xlu0 %v629, 96
      %v712 = vpop.permute.xlu0 %711
      %713 = vrot.lane.b32.xlu0 %v631, 96
      %v714 = vpop.permute.xlu0 %713
      %715 = vrot.lane.b32.xlu0 %v630, 96
      %v716 = vpop.permute.xlu0 %715
      %717 = vrot.lane.b32.xlu0 %v632, 96
      %v718 = vpop.permute.xlu0 %717
      %vm719 = vcmp.lt.s32.totalorder %v369, 96
      %v720 = vsel %vm719, %v712, %v716
      %v721 = vsel %vm719, %v714, %v718
      %v722 = vsel %vm719, %v716, %v712
      %v723 = vsel %vm719, %v718, %v714
      %724 = vrot.lane.b32.xlu0 %v629, 94
      %v725 = vpop.permute.xlu0 %724
      %726 = vrot.lane.b32.xlu0 %v631, 94
      %v727 = vpop.permute.xlu0 %726
      %728 = vrot.lane.b32.xlu0 %v630, 94
      %v729 = vpop.permute.xlu0 %728
      %730 = vrot.lane.b32.xlu0 %v632, 94
      %v731 = vpop.permute.xlu0 %730
      %vm732 = vcmp.lt.s32.totalorder %v369, 94
      %v733 = vsel %vm732, %v725, %v729
      %v734 = vsel %vm732, %v727, %v731
      %v735 = vsel %vm732, %v729, %v725
      %v736 = vsel %vm732, %v731, %v727
      %v737 = vld [vmem:[%s6] sm:$0xff]
      %v738 = vld [vmem:[%s6 + $0x8] sm:$0xff]
      %v739 = vld [vmem:[%s6 + $0x10] sm:$0xff]
      %v740 = vld [vmem:[%s6 + $0x18] sm:$0xff]
      %v741 = vld [vmem:[%s6 + $0x20] sm:$0xff]
      %v742 = vld [vmem:[%s6 + $0x28] sm:$0xff]
      %v743 = vld [vmem:[%s6 + $0x30] sm:$0xff]
      %v744 = vld [vmem:[%s6 + $0x38] sm:$0xff]
      %v745 = vld [vmem:[%s6 + $0x40] sm:$0xff]
      %v746 = vld [vmem:[%s6 + $0x48] sm:$0xff]
      %v747 = vld [vmem:[%s6 + $0x50] sm:$0xff]
      %v748 = vld [vmem:[%s6 + $0x58] sm:$0xff]
      %v749 = vld [vmem:[%s6 + $0x60] sm:$0xff]
      %v750 = vld [vmem:[%s6 + $0x68] sm:$0xff]
      %v751 = vld [vmem:[%s6 + $0x70] sm:$0xff]
      %v752 = vld [vmem:[%s6 + $0x78] sm:$0xff]
      %v753 = vld [vmem:[%s6 + $0x80] sm:$0xff]
      %v754 = vld [vmem:[%s6 + $0x88] sm:$0xff]
      %v755 = vld [vmem:[%s6 + $0x90] sm:$0xff]
      %v756 = vld [vmem:[%s6 + $0x98] sm:$0xff]
      %v757 = vld [vmem:[%s6 + $0xa0] sm:$0xff]
      %v758 = vld [vmem:[%s6 + $0xa8] sm:$0xff]
      %v759 = vld [vmem:[%s6 + $0xb0] sm:$0xff]
      %v760 = vld [vmem:[%s6 + $0xb8] sm:$0xff]
      %v761 = vld [vmem:[%s6 + $0xc0] sm:$0xff]
      %v762 = vld [vmem:[%s6 + $0xc8] sm:$0xff]
      %v763 = vld [vmem:[%s6 + $0xd0] sm:$0xff]
      %v764 = vld [vmem:[%s6 + $0xd8] sm:$0xff]
      %v765 = vld [vmem:[%s6 + $0xe0] sm:$0xff]
      %v766 = vld [vmem:[%s6 + $0xe8] sm:$0xff]
      %v767 = vld [vmem:[%s6 + $0xf0] sm:$0xff]
      %v768 = vld [vmem:[%s6 + $0xf8] sm:$0xff]
      %v769 = vld [vmem:[%s6 + $0x100] sm:$0xff]
      %v770 = vld [vmem:[%s6 + $0x108] sm:$0xff]
      %v771 = vld [vmem:[%s6 + $0x110] sm:$0xff]
      %v772 = vld [vmem:[%s6 + $0x118] sm:$0xff]
      %vm773 = vcmp.gt.f32.partialorder %v737, 0.5
      %vm774 = vcmp.gt.f32.partialorder %v738, 0.5
      %vm775 = vcmp.gt.f32.partialorder %v739, 0.5
      %vm776 = vcmp.gt.f32.partialorder %v740, 0.5
      %vm777 = vcmp.gt.f32.partialorder %v741, 0.5
      %vm778 = vcmp.gt.f32.partialorder %v742, 0.5
      %vm779 = vcmp.gt.f32.partialorder %v743, 0.5
      %vm780 = vcmp.gt.f32.partialorder %v744, 0.5
      %vm781 = vcmp.gt.f32.partialorder %v745, 0.5
      %vm782 = vcmp.gt.f32.partialorder %v746, 0.5
      %vm783 = vcmp.gt.f32.partialorder %v747, 0.5
      %vm784 = vcmp.gt.f32.partialorder %v748, 0.5
      %vm785 = vcmp.gt.f32.partialorder %v749, 0.5
      %vm786 = vcmp.gt.f32.partialorder %v750, 0.5
      %vm787 = vcmp.gt.f32.partialorder %v751, 0.5
      %vm788 = vcmp.gt.f32.partialorder %v752, 0.5
      %vm789 = vcmp.gt.f32.partialorder %v753, 0.5
      %vm790 = vcmp.gt.f32.partialorder %v754, 0.5
      %vm791 = vcmp.gt.f32.partialorder %v755, 0.5
      %vm792 = vcmp.gt.f32.partialorder %v756, 0.5
      %vm793 = vcmp.gt.f32.partialorder %v757, 0.5
      %vm794 = vcmp.gt.f32.partialorder %v758, 0.5
      %vm795 = vcmp.gt.f32.partialorder %v759, 0.5
      %vm796 = vcmp.gt.f32.partialorder %v760, 0.5
      %vm797 = vcmp.gt.f32.partialorder %v761, 0.5
      %vm798 = vcmp.gt.f32.partialorder %v762, 0.5
      %vm799 = vcmp.gt.f32.partialorder %v763, 0.5
      %vm800 = vcmp.gt.f32.partialorder %v764, 0.5
      %vm801 = vcmp.gt.f32.partialorder %v765, 0.5
      %vm802 = vcmp.gt.f32.partialorder %v766, 0.5
      %vm803 = vcmp.gt.f32.partialorder %v767, 0.5
      %vm804 = vcmp.gt.f32.partialorder %v768, 0.5
      %vm805 = vcmp.gt.f32.partialorder %v769, 0.5
      %vm806 = vcmp.gt.f32.partialorder %v770, 0.5
      %vm807 = vcmp.gt.f32.partialorder %v771, 0.5
      %vm808 = vcmp.gt.f32.partialorder %v772, 0.5
      %v809 = vsel %vm773, %v644, 0.0
      %v810 = vsel %vm774, %v642, 0.0
      %v811 = vsel %vm775, %v645, 0.0
      %v812 = vsel %vm776, %v643, 0.0
      %v813 = vsel %vm777, %v657, 0.0
      %v814 = vsel %vm778, %v655, 0.0
      %v815 = vsel %vm779, %v658, 0.0
      %v816 = vsel %vm780, %v656, 0.0
      %v817 = vsel %vm781, %v670, 0.0
      %v818 = vsel %vm782, %v668, 0.0
      %v819 = vsel %vm783, %v671, 0.0
      %v820 = vsel %vm784, %v669, 0.0
      %v821 = vsel %vm785, %v683, 0.0
      %v822 = vsel %vm786, %v681, 0.0
      %v823 = vsel %vm787, %v684, 0.0
      %v824 = vsel %vm788, %v682, 0.0
      %v825 = vsel %vm789, %v629, 0.0
      %v826 = vsel %vm790, %v630, 0.0
      %v827 = vsel %vm791, %v631, 0.0
      %v828 = vsel %vm792, %v632, 0.0
      %v829 = vsel %vm793, %v694, 0.0
      %v830 = vsel %vm794, %v696, 0.0
      %v831 = vsel %vm795, %v695, 0.0
      %v832 = vsel %vm796, %v697, 0.0
      %v833 = vsel %vm797, %v707, 0.0
      %v834 = vsel %vm798, %v709, 0.0
      %v835 = vsel %vm799, %v708, 0.0
      %v836 = vsel %vm800, %v710, 0.0
      %v837 = vsel %vm801, %v720, 0.0
      %v838 = vsel %vm802, %v722, 0.0
      %v839 = vsel %vm803, %v721, 0.0
      %v840 = vsel %vm804, %v723, 0.0
      %v841 = vsel %vm805, %v733, 0.0
      %v842 = vsel %vm806, %v735, 0.0
      %v843 = vsel %vm807, %v734, 0.0
      %v844 = vsel %vm808, %v736, 0.0
      %v845 = vld [vmem:[%s4] sm:$0xff]
      %v846 = vld [vmem:[%s4 + $0x8] sm:$0xff]
      %v847 = vld [vmem:[%s4 + $0x10] sm:$0xff]
      %v848 = vld [vmem:[%s4 + $0x18] sm:$0xff]
      %v849 = vld [vmem:[%s4 + $0x20] sm:$0xff]
      %v850 = vld [vmem:[%s4 + $0x28] sm:$0xff]
      %v851 = vld [vmem:[%s4 + $0x30] sm:$0xff]
      %v852 = vld [vmem:[%s4 + $0x38] sm:$0xff]
      %v853 = vld [vmem:[%s5] sm:$0xff]
      %v854 = vld [vmem:[%s5 + $0x8] sm:$0xff]
      %v855 = vld [vmem:[%s5 + $0x10] sm:$0xff]
      %v856 = vld [vmem:[%s5 + $0x18] sm:$0xff]
      %858 = vset.pattern.permute.xlu0 0
      %859 = vperm.xlu0 %858, %v853
      %v860 = vpop.permute.xlu0 %859
      %863 = vset.pattern.permute.xlu0 0
      %864 = vperm.xlu0 %863, %v854
      %v865 = vpop.permute.xlu0 %864
      %868 = vset.pattern.permute.xlu0 0
      %869 = vperm.xlu0 %868, %v855
      %v870 = vpop.permute.xlu0 %869
      %873 = vset.pattern.permute.xlu0 0
      %874 = vperm.xlu0 %873, %v856
      %v875 = vpop.permute.xlu0 %874
      %vm877 = vcmask 130048
      %v879 = vsel %vm877, %v846, 0
      %v882 = vsel %vm877, %v848, 0
      %v885 = vsel %vm877, %v850, 0
      %v888 = vsel %vm877, %v852, 0
      %890 = vmatprep.subr.mxu0 %v840
      %891 = vmatpush1.msra.mxu0 %v839
      %892 = vmatprep.subr.mxu0 %v838
      %893 = vmatpush1.msra.mxu0 %v837
      %894 = vmatprep.subr.mxu0 %v836
      %895 = vmatpush1.msra.mxu0 %v835
      %896 = vmatprep.subr.mxu0 %v834
      %897 = vmatpush1.msra.mxu0 %v833
      %898 = vmatprep.subr.mxu0 %v832
      %899 = vmatpush1.msra.mxu0 %v831
      %900 = vmatprep.subr.mxu0 %v830
      %901 = vmatpush1.msra.mxu0 %v829
      %902 = vmatprep.subr.mxu0 %v828
      %903 = vmatpush1.msra.mxu0 %v827
      %904 = vmatprep.subr.mxu0 %v826
      %905 = vmatpush1.msra.mxu0 %v825
      %906 = vmatprep.subr.mxu0 %v824
      %907 = vmatpush1.msra.mxu0 %v823
      %908 = vmatprep.subr.mxu0 %v822
      %909 = vmatpush1.msra.mxu0 %v821
      %910 = vmatprep.subr.mxu0 %v820
      %911 = vmatpush1.msra.mxu0 %v819
      %912 = vmatprep.subr.mxu0 %v818
      %913 = vmatpush1.msra.mxu0 %v817
      %914 = vmatprep.subr.mxu0 %v816
      %915 = vmatpush1.msra.mxu0 %v815
      %916 = vmatprep.subr.mxu0 %v814
      %917 = vmatpush1.msra.mxu0 %v813
      %918 = vmatprep.subr.mxu0 %v812
      %919 = vmatpush1.msra.mxu0 %v811
      %920 = vmatprep.subr.mxu0 %v810
      %921 = vmatpush1.msra.mxu0 %v809
      %922 = vmatprep.subr.mxu0 0.0
      %923 = vmatpush2.msra.mxu0 0.0
      %924 = vmatprep.subr.mxu0 0.0
      %925 = vmatpush2.msra.mxu0 0.0
      %926 = vmatprep.subr.mxu0 0.0
      %927 = vmatpush2.msra.mxu0 0.0
      %928 = vmatprep.subr.mxu0 0.0
      %929 = vmatpush2.msra.mxu0 0.0
      %930 = vmatprep.subr.mxu0 0.0
      %931 = vmatpush2.msra.mxu0 0.0
      %932 = vmatprep.subr.mxu0 0.0
      %933 = vmatpush2.msra.mxu0 0.0
      %934 = vmatprep.subr.mxu0 0.0
      %935 = vmatpush2.msra.mxu0 0.0
      %936 = vmatprep.subr.mxu0 0.0
      %937 = vmatpush2.msra.mxu0 0.0
      %938 = vmatprep.subr.mxu0 0.0
      %939 = vmatpush2.msra.mxu0 0.0
      %940 = vmatprep.subr.mxu0 0.0
      %941 = vmatpush2.msra.mxu0 0.0
      %942 = vmatprep.subr.mxu0 0.0
      %943 = vmatpush2.msra.mxu0 0.0
      %944 = vmatprep.subr.mxu0 0.0
      %945 = vmatpush2.msra.mxu0 0.0
      %946 = vmatprep.subr.mxu0 0.0
      %947 = vmatpush2.msra.mxu0 0.0
      %948 = vmatprep.subr.mxu0 0.0
      %949 = vmatpush2.msra.mxu0 0.0
      %950 = vmatprep.subr.mxu0 %v844
      %951 = vmatpush2.msra.mxu0 %v843
      %952 = vmatprep.subr.mxu0 %v842
      %953 = vmatpush2.msra.mxu0 %v841
      %954 = vmatprep.mubr.f32.mxu0 %v879
      %955 = vmatmul.mubr.f32.gmra.mxu0 %v845
      %v956 = vpop.f32.mrf.mxu0
      %v957 = vadd.f32 %v860, %v956
      %v958 = vpop.f32.mrf.mxu0
      %v959 = vadd.f32 %v860, %v958
      %960 = vmatprep.mubr.f32.mxu0 %v882
      %961 = vmatmul.mubr.f32.gmra.mxu0 %v847
      %v962 = vpop.f32.mrf.mxu0
      %v963 = vadd.f32 %v865, %v962
      %v964 = vpop.f32.mrf.mxu0
      %v965 = vadd.f32 %v865, %v964
      %966 = vmatprep.mubr.f32.mxu0 %v885
      %967 = vmatmul.mubr.f32.gmra.mxu0 %v849
      %v968 = vpop.f32.mrf.mxu0
      %v969 = vadd.f32 %v870, %v968
      %v970 = vpop.f32.mrf.mxu0
      %v971 = vadd.f32 %v870, %v970
      %972 = vmatprep.mubr.f32.mxu0 %v888
      %973 = vmatmul.mubr.f32.gmra.mxu0 %v851
      %v974 = vpop.f32.mrf.mxu0
      %v975 = vadd.f32 %v875, %v974
      %v976 = vpop.f32.mrf.mxu0
      %v977 = vadd.f32 %v875, %v976
      %978 = vdwg.mxu0
      %vm979 = vcmp.gt.f32.partialorder %v957, 0.0
      %vm980 = vcmp.gt.f32.partialorder %v959, 0.0
      %vm981 = vcmp.gt.f32.partialorder %v963, 0.0
      %vm982 = vcmp.gt.f32.partialorder %v965, 0.0
      %vm983 = vcmp.gt.f32.partialorder %v969, 0.0
      %vm984 = vcmp.gt.f32.partialorder %v971, 0.0
      %vm985 = vcmp.gt.f32.partialorder %v975, 0.0
      %vm986 = vcmp.gt.f32.partialorder %v977, 0.0
      %v987 = vmul.f32 %v957, 0.1
      %v988 = vmul.f32 %v959, 0.1
      %v989 = vmul.f32 %v963, 0.1
      %v990 = vmul.f32 %v965, 0.1
      %v991 = vmul.f32 %v969, 0.1
      %v992 = vmul.f32 %v971, 0.1
      %v993 = vmul.f32 %v975, 0.1
      %v994 = vmul.f32 %v977, 0.1
      %v995 = vsel %vm979, %v957, %v987
      %v996 = vsel %vm980, %v959, %v988
      %v997 = vsel %vm981, %v963, %v989
      %v998 = vsel %vm982, %v965, %v990
      %v999 = vsel %vm983, %v969, %v991
      %v1000 = vsel %vm984, %v971, %v992
      %v1001 = vsel %vm985, %v975, %v993
      %v1002 = vsel %vm986, %v977, %v994
      %1003 = vrot.lane.b32.xlu0 %v995, 126
      %v1004 = vpop.permute.xlu0 %1003
      %1005 = vrot.lane.b32.xlu0 %v997, 126
      %v1006 = vpop.permute.xlu0 %1005
      %1007 = vrot.lane.b32.xlu0 %v999, 126
      %v1008 = vpop.permute.xlu0 %1007
      %1009 = vrot.lane.b32.xlu0 %v1001, 126
      %v1010 = vpop.permute.xlu0 %1009
      %1011 = vrot.lane.b32.xlu0 %v996, 126
      %v1012 = vpop.permute.xlu0 %1011
      %1013 = vrot.lane.b32.xlu0 %v998, 126
      %v1014 = vpop.permute.xlu0 %1013
      %1015 = vrot.lane.b32.xlu0 %v1000, 126
      %v1016 = vpop.permute.xlu0 %1015
      %1017 = vrot.lane.b32.xlu0 %v1002, 126
      %v1018 = vpop.permute.xlu0 %1017
      %v1019 = vsel %vm693, %v1004, %v1012
      %v1020 = vsel %vm693, %v1006, %v1014
      %v1021 = vsel %vm693, %v1008, %v1016
      %v1022 = vsel %vm693, %v1010, %v1018
      %v1023 = vsel %vm693, %v1012, %v1004
      %v1024 = vsel %vm693, %v1014, %v1006
      %v1025 = vsel %vm693, %v1016, %v1008
      %v1026 = vsel %vm693, %v1018, %v1010
      %v1027 = vmax.f32 %v995, %v1019
      %v1028 = vmax.f32 %v996, %v1023
      %v1029 = vmax.f32 %v997, %v1020
      %v1030 = vmax.f32 %v998, %v1024
      %v1031 = vmax.f32 %v999, %v1021
      %v1032 = vmax.f32 %v1000, %v1025
      %v1033 = vmax.f32 %v1001, %v1022
      %v1034 = vmax.f32 %v1002, %v1026
      %1035 = vrot.lane.b32.xlu0 %v1027, 96
      %v1036 = vpop.permute.xlu0 %1035
      %1037 = vrot.lane.b32.xlu0 %v1029, 96
      %v1038 = vpop.permute.xlu0 %1037
      %1039 = vrot.lane.b32.xlu0 %v1031, 96
      %v1040 = vpop.permute.xlu0 %1039
      %1041 = vrot.lane.b32.xlu0 %v1033, 96
      %v1042 = vpop.permute.xlu0 %1041
      %1043 = vrot.lane.b32.xlu0 %v1028, 96
      %v1044 = vpop.permute.xlu0 %1043
      %1045 = vrot.lane.b32.xlu0 %v1030, 96
      %v1046 = vpop.permute.xlu0 %1045
      %1047 = vrot.lane.b32.xlu0 %v1032, 96
      %v1048 = vpop.permute.xlu0 %1047
      %1049 = vrot.lane.b32.xlu0 %v1034, 96
      %v1050 = vpop.permute.xlu0 %1049
      %v1051 = vsel %vm719, %v1036, %v1044
      %v1052 = vsel %vm719, %v1038, %v1046
      %v1053 = vsel %vm719, %v1040, %v1048
      %v1054 = vsel %vm719, %v1042, %v1050
      %v1055 = vsel %vm719, %v1044, %v1036
      %v1056 = vsel %vm719, %v1046, %v1038
      %v1057 = vsel %vm719, %v1048, %v1040
      %v1058 = vsel %vm719, %v1050, %v1042
      %v1059 = vmax.f32 %v1027, %v1051
      %v1060 = vmax.f32 %v1028, %v1055
      %v1061 = vmax.f32 %v1029, %v1052
      %v1062 = vmax.f32 %v1030, %v1056
      %v1063 = vmax.f32 %v1031, %v1053
      %v1064 = vmax.f32 %v1032, %v1057
      %v1065 = vmax.f32 %v1033, %v1054
      %v1066 = vmax.f32 %v1034, %v1058
      %v1067 = vld [vmem:[%s7] sm:$0xff]
      %v1068 = vld [vmem:[%s7 + $0x8] sm:$0xff]
      %v1069 = vld [vmem:[%s7 + $0x10] sm:$0xff]
      %v1070 = vld [vmem:[%s7 + $0x18] sm:$0xff]
      %v1071 = vld [vmem:[%s7 + $0x20] sm:$0xff]
      %v1072 = vld [vmem:[%s7 + $0x28] sm:$0xff]
      %v1073 = vld [vmem:[%s7 + $0x30] sm:$0xff]
      %v1074 = vld [vmem:[%s7 + $0x38] sm:$0xff]
      %v1075 = vld [vmem:[%s7 + $0x40] sm:$0xff]
      %v1076 = vld [vmem:[%s7 + $0x48] sm:$0xff]
      %v1077 = vld [vmem:[%s7 + $0x50] sm:$0xff]
      %v1078 = vld [vmem:[%s7 + $0x58] sm:$0xff]
      %v1079 = vld [vmem:[%s7 + $0x60] sm:$0xff]
      %v1080 = vld [vmem:[%s7 + $0x68] sm:$0xff]
      %v1081 = vld [vmem:[%s7 + $0x70] sm:$0xff]
      %v1082 = vld [vmem:[%s7 + $0x78] sm:$0xff]
      %v1083 = vld [vmem:[%s7 + $0x80] sm:$0xff]
      %v1084 = vld [vmem:[%s7 + $0x88] sm:$0xff]
      %v1085 = vld [vmem:[%s7 + $0x90] sm:$0xff]
      %v1086 = vld [vmem:[%s7 + $0x98] sm:$0xff]
      %v1087 = vld [vmem:[%s7 + $0xa0] sm:$0xff]
      %v1088 = vld [vmem:[%s7 + $0xa8] sm:$0xff]
      %v1089 = vld [vmem:[%s7 + $0xb0] sm:$0xff]
      %v1090 = vld [vmem:[%s7 + $0xb8] sm:$0xff]
      %v1091 = vld [vmem:[%s7 + $0xc0] sm:$0xff]
      %v1092 = vld [vmem:[%s7 + $0xc8] sm:$0xff]
      %v1093 = vld [vmem:[%s7 + $0xd0] sm:$0xff]
      %v1094 = vld [vmem:[%s7 + $0xd8] sm:$0xff]
      %v1095 = vld [vmem:[%s7 + $0xe0] sm:$0xff]
      %v1096 = vld [vmem:[%s7 + $0xe8] sm:$0xff]
      %v1097 = vld [vmem:[%s7 + $0xf0] sm:$0xff]
      %v1098 = vld [vmem:[%s7 + $0xf8] sm:$0xff]
      %1099 = vmatprep.subr.mxu0 0.0
      %1100 = vmatpush1.msra.mxu0 %v1082
      %1101 = vmatprep.subr.mxu0 0.0
      %1102 = vmatpush1.msra.mxu0 %v1081
      %1103 = vmatprep.subr.mxu0 0.0
      %1104 = vmatpush1.msra.mxu0 %v1080
      %1105 = vmatprep.subr.mxu0 0.0
      %1106 = vmatpush1.msra.mxu0 %v1079
      %1107 = vmatprep.subr.mxu0 0.0
      %1108 = vmatpush1.msra.mxu0 %v1078
      %1109 = vmatprep.subr.mxu0 0.0
      %1110 = vmatpush1.msra.mxu0 %v1077
      %1111 = vmatprep.subr.mxu0 0.0
      %1112 = vmatpush1.msra.mxu0 %v1076
      %1113 = vmatprep.subr.mxu0 0.0
      %1114 = vmatpush1.msra.mxu0 %v1075
      %1115 = vmatprep.subr.mxu0 0.0
      %1116 = vmatpush1.msra.mxu0 %v1074
      %1117 = vmatprep.subr.mxu0 0.0
      %1118 = vmatpush1.msra.mxu0 %v1073
      %1119 = vmatprep.subr.mxu0 0.0
      %1120 = vmatpush1.msra.mxu0 %v1072
      %1121 = vmatprep.subr.mxu0 0.0
      %1122 = vmatpush1.msra.mxu0 %v1071
      %1123 = vmatprep.subr.mxu0 0.0
      %1124 = vmatpush1.msra.mxu0 %v1070
      %1125 = vmatprep.subr.mxu0 0.0
      %1126 = vmatpush1.msra.mxu0 %v1069
      %1127 = vmatprep.subr.mxu0 0.0
      %1128 = vmatpush1.msra.mxu0 %v1068
      %1129 = vmatprep.subr.mxu0 0.0
      %1130 = vmatpush1.msra.mxu0 %v1067
      %1131 = vmatprep.subr.mxu0 0.0
      %1132 = vmatpush2.msra.mxu0 %v1098
      %1133 = vmatprep.subr.mxu0 0.0
      %1134 = vmatpush2.msra.mxu0 %v1097
      %1135 = vmatprep.subr.mxu0 0.0
      %1136 = vmatpush2.msra.mxu0 %v1096
      %1137 = vmatprep.subr.mxu0 0.0
      %1138 = vmatpush2.msra.mxu0 %v1095
      %1139 = vmatprep.subr.mxu0 0.0
      %1140 = vmatpush2.msra.mxu0 %v1094
      %1141 = vmatprep.subr.mxu0 0.0
      %1142 = vmatpush2.msra.mxu0 %v1093
      %1143 = vmatprep.subr.mxu0 0.0
      %1144 = vmatpush2.msra.mxu0 %v1092
      %1145 = vmatprep.subr.mxu0 0.0
      %1146 = vmatpush2.msra.mxu0 %v1091
      %1147 = vmatprep.subr.mxu0 0.0
      %1148 = vmatpush2.msra.mxu0 %v1090
      %1149 = vmatprep.subr.mxu0 0.0
      %1150 = vmatpush2.msra.mxu0 %v1089
      %1151 = vmatprep.subr.mxu0 0.0
      %1152 = vmatpush2.msra.mxu0 %v1088
      %1153 = vmatprep.subr.mxu0 0.0
      %1154 = vmatpush2.msra.mxu0 %v1087
      %1155 = vmatprep.subr.mxu0 0.0
      %1156 = vmatpush2.msra.mxu0 %v1086
      %1157 = vmatprep.subr.mxu0 0.0
      %1158 = vmatpush2.msra.mxu0 %v1085
      %1159 = vmatprep.subr.mxu0 0.0
      %1160 = vmatpush2.msra.mxu0 %v1084
      %1161 = vmatprep.subr.mxu0 0.0
      %1162 = vmatpush2.msra.mxu0 %v1083
      %1163 = vmatprep.mubr.f32.mxu0 %v1060
      %1164 = vmatmul.mubr.f32.gmra.mxu0 %v1059
      %v1165 = vpop.f32.mrf.mxu0
      %v1166 = vadd.f32 0.0, %v1165
      %v1167 = vpop.f32.mrf.mxu0
      %1168 = vmatprep.mubr.f32.mxu0 %v1062
      %1169 = vmatmul.mubr.f32.gmra.mxu0 %v1061
      %v1170 = vpop.f32.mrf.mxu0
      %v1171 = vadd.f32 0.0, %v1170
      %v1172 = vpop.f32.mrf.mxu0
      %1173 = vmatprep.mubr.f32.mxu0 %v1064
      %1174 = vmatmul.mubr.f32.gmra.mxu0 %v1063
      %v1175 = vpop.f32.mrf.mxu0
      %v1176 = vadd.f32 0.0, %v1175
      %v1177 = vpop.f32.mrf.mxu0
      %1178 = vmatprep.mubr.f32.mxu0 %v1066
      %1179 = vmatmul.mubr.f32.gmra.mxu0 %v1065
      %v1180 = vpop.f32.mrf.mxu0
      %v1181 = vadd.f32 0.0, %v1180
      %v1182 = vpop.f32.mrf.mxu0
      %1183 = vdwg.mxu0
      %v1184 = vld [vmem:[%s8] sm:$0xff]
      %v1185 = vld [vmem:[%s8 + $0x8] sm:$0xff]
      %v1186 = vld [vmem:[%s8 + $0x10] sm:$0xff]
      %v1187 = vld [vmem:[%s8 + $0x18] sm:$0x7]
      %v1188 = vld [vmem:[%s9] sm:$0xff]
      %v1189 = vld [vmem:[%s9 + $0x8] sm:$0xff]
      %v1190 = vld [vmem:[%s9 + $0x10] sm:$0xff]
      %v1191 = vld [vmem:[%s9 + $0x18] sm:$0x7]
      %1193 = vset.pattern.permute.xlu0 0
      %1194 = vperm.xlu0 %1193, %v1188
      %v1195 = vpop.permute.xlu0 %1194
      %1198 = vset.pattern.permute.xlu0 0
      %1199 = vperm.xlu0 %1198, %v1189
      %v1200 = vpop.permute.xlu0 %1199
      %1203 = vset.pattern.permute.xlu0 0
      %1204 = vperm.xlu0 %1203, %v1190
      %v1205 = vpop.permute.xlu0 %1204
      %1208 = vset.pattern.permute.xlu0 0
      %1209 = vperm.xlu0 %1208, %v1191
      %v1210 = vpop.permute.xlu0 %1209
      %vm1212 = vcmask 261120
      %v1214 = vsel %vm1212, %v1184, 0
      %v1217 = vsel %vm1212, %v1185, 0
      %v1220 = vsel %vm1212, %v1186, 0
      %v1223 = vsel %vm1212, %v1187, 0
      %1225 = vmatprep.subr.mxu0 0.0
      %1226 = vmatpush1.msra.mxu0 0.0
      %1227 = vmatprep.subr.mxu0 0.0
      %1228 = vmatpush1.msra.mxu0 0.0
      %1229 = vmatprep.subr.mxu0 0.0
      %1230 = vmatpush1.msra.mxu0 0.0
      %1231 = vmatprep.subr.mxu0 0.0
      %1232 = vmatpush1.msra.mxu0 0.0
      %1233 = vmatprep.subr.mxu0 0.0
      %1234 = vmatpush1.msra.mxu0 0.0
      %1235 = vmatprep.subr.mxu0 0.0
      %1236 = vmatpush1.msra.mxu0 0.0
      %1237 = vmatprep.subr.mxu0 0.0
      %1238 = vmatpush1.msra.mxu0 0.0
      %1239 = vmatprep.subr.mxu0 0.0
      %1240 = vmatpush1.msra.mxu0 0.0
      %1241 = vmatprep.subr.mxu0 0.0
      %1242 = vmatpush1.msra.mxu0 0.0
      %1243 = vmatprep.subr.mxu0 0.0
      %1244 = vmatpush1.msra.mxu0 0.0
      %1245 = vmatprep.subr.mxu0 0.0
      %1246 = vmatpush1.msra.mxu0 0.0
      %1247 = vmatprep.subr.mxu0 0.0
      %1248 = vmatpush1.msra.mxu0 0.0
      %1249 = vmatprep.subr.mxu0 0.0
      %1250 = vmatpush1.msra.mxu0 %v1181
      %1251 = vmatprep.subr.mxu0 0.0
      %1252 = vmatpush1.msra.mxu0 %v1176
      %1253 = vmatprep.subr.mxu0 0.0
      %1254 = vmatpush1.msra.mxu0 %v1171
      %1255 = vmatprep.subr.mxu0 0.0
      %1256 = vmatpush1.msra.mxu0 %v1166
      %1257 = vmatprep.subr.mxu0 0.0
      %1258 = vmatpush2.msra.mxu0 0.0
      %1259 = vmatprep.subr.mxu0 0.0
      %1260 = vmatpush2.msra.mxu0 0.0
      %1261 = vmatprep.subr.mxu0 0.0
      %1262 = vmatpush2.msra.mxu0 0.0
      %1263 = vmatprep.subr.mxu0 0.0
      %1264 = vmatpush2.msra.mxu0 0.0
      %1265 = vmatprep.subr.mxu0 0.0
      %1266 = vmatpush2.msra.mxu0 0.0
      %1267 = vmatprep.subr.mxu0 0.0
      %1268 = vmatpush2.msra.mxu0 0.0
      %1269 = vmatprep.subr.mxu0 0.0
      %1270 = vmatpush2.msra.mxu0 0.0
      %1271 = vmatprep.subr.mxu0 0.0
      %1272 = vmatpush2.msra.mxu0 0.0
      %1273 = vmatprep.subr.mxu0 0.0
      %1274 = vmatpush2.msra.mxu0 0.0
      %1275 = vmatprep.subr.mxu0 0.0
      %1276 = vmatpush2.msra.mxu0 0.0
      %1277 = vmatprep.subr.mxu0 0.0
      %1278 = vmatpush2.msra.mxu0 0.0
      %1279 = vmatprep.subr.mxu0 0.0
      %1280 = vmatpush2.msra.mxu0 0.0
      %1281 = vmatprep.subr.mxu0 0.0
      %1282 = vmatpush2.msra.mxu0 0.0
      %1283 = vmatprep.subr.mxu0 0.0
      %1284 = vmatpush2.msra.mxu0 0.0
      %1285 = vmatprep.subr.mxu0 0.0
      %1286 = vmatpush2.msra.mxu0 0.0
      %1287 = vmatprep.subr.mxu0 0.0
      %1288 = vmatpush2.msra.mxu0 0.0
      %1289 = vmatprep.mubr.f32.mxu0 0.0
      %1290 = vmatmul.mubr.f32.gmra.mxu0 %v1214
      %v1291 = vpop.f32.mrf.mxu0
      %v1292 = vadd.f32 %v1195, %v1291
      %v1293 = vpop.f32.mrf.mxu0
      %1294 = vmatprep.mubr.f32.mxu0 0.0
      %1295 = vmatmul.mubr.f32.gmra.mxu0 %v1217
      %v1296 = vpop.f32.mrf.mxu0
      %v1297 = vadd.f32 %v1200, %v1296
      %v1298 = vpop.f32.mrf.mxu0
      %1299 = vmatprep.mubr.f32.mxu0 0.0
      %1300 = vmatmul.mubr.f32.gmra.mxu0 %v1220
      %v1301 = vpop.f32.mrf.mxu0
      %v1302 = vadd.f32 %v1205, %v1301
      %v1303 = vpop.f32.mrf.mxu0
      %1304 = vmatprep.mubr.f32.mxu0 0.0
      %1305 = vmatmul.mubr.f32.gmra.mxu0 %v1223
      %v1306 = vpop.f32.mrf.mxu0
      %v1307 = vadd.f32 %v1210, %v1306
      %v1308 = vpop.f32.mrf.mxu0
      %1309 = vdwg.mxu0
      %1310 = vst.msk [vmem:[%s359] sm:$0xff] %vm877, %v1292
      %1311 = vst.msk [vmem:[%s359 + $0x8] sm:$0xff] %vm877, %v1297
      %1312 = vst.msk [vmem:[%s359 + $0x10] sm:$0xff] %vm877, %v1302
      %vm1313 = vcmask 124928
      %1314 = vst.msk [vmem:[%s359 + $0x18] sm:$0x7] %vm1313, %v1307
      %p1315 = scmp.lt.s32.totalorder %s21, 1
      %s1316 = scalar_select %p1315, %s21, 1
      %s1317 = smul.addr %s1316, 4
      %s1318 = smul.addr %s1317, 8
      %s1319 = scalar_lea.vmem %s10, %s1318
      // Predicated region
      $region61: #{yolo_forward.1} parent=59 // pred_check
        %p1320 = pneg %p254
      $region62: #{yolo_forward.1} parent=59 // pred_check_branch
        %1322 = sbr.rel (%p1320) target = $region64
      $region63: #{yolo_forward.1} parent=59 // pred_region
        _
      $region64: #{yolo_forward.1} parent=59 // pred_fallthru
        _
    $region60: #{yolo_forward.1} parent=5 // pred_fallthru
      _
    %p1323 = scmp.le.s32.totalorder 2, %s16
    // Predicated region
    $region65: #{yolo_forward.1} parent=5 // pred_check
      %p1324 = pneg %p1323
    $region66: #{yolo_forward.1} parent=5 // pred_check_branch
      %1326 = sbr.rel (%p1324) target = $region68
    $region67: #{yolo_forward.1} parent=5 // pred_region
      %s1327 = ssub.s32 %s16, 2
      // Predicated region
      $region69: #{yolo_forward.1} parent=67 // pred_check
        %p1328 = pneg %p260
      $region70: #{yolo_forward.1} parent=67 // pred_check_branch
        %1330 = sbr.rel (%p1328) target = $region72
      $region71: #{yolo_forward.1} parent=67 // pred_region
        %p1331 = scmp.lt.s32.totalorder %s22, 1
        %s1332 = scalar_select %p1331, %s22, 1
        %s1333 = smul.addr %s1332, 4
        %s1334 = smul.addr %s1333, 8
        %s1335 = scalar_lea.vmem %s10, %s1334
      $region72: #{yolo_forward.1} parent=67 // pred_fallthru
        _
    $region68: #{yolo_forward.1} parent=5 // pred_fallthru
      _
  $region6: #{yolo_forward.1} parent=0 // loop_footer
    %s20 = sadd.s32 1, %s16
  $region7: #{yolo_forward.1} parent=0 // loop_footer_branch
    %15 = sbr.rel target = $region3
  $region8: #{yolo_forward.1} parent=0 // loop_exit
    _

</llo_original>
